<compile_context>
chip_gen: v6e
topology: v6e:2x2x1
jax: 0.10.0
libtpu: 0.0.40
codegen_flags: <defaults>
</compile_context>

<pallas_src>
import functools

import jax
import jax.numpy as jnp
from jax.experimental import pallas as pl
from jax.experimental.pallas import tpu as pltpu


def attention_block_kernel(x_ref, g1_ref, be1_ref,
                           wq_ref, bq_ref, wk_ref, bk_ref, wv_ref, bv_ref,
                           wo_ref, bo_ref, g2_ref, be2_ref,
                           w1_ref, b1_ref, w2_ref, b2_ref,
                           o_ref, *, num_heads):
    """One grid step = one batch element; whole block (LN1 -> MHA -> LN2 -> MLP)
    fused. Weights arrive pre-transposed / pre-split per head (no in-kernel .T)."""
    eps = 1e-5
    cdt = wq_ref.dtype                       # bf16 compute dtype for MXU feeds
    x = x_ref[...]                           # (S, E) f32 (batch dim squeezed)
    S, E = x.shape

    # ---- LayerNorm 1 (f32, biased variance, eps=1e-5 — matches nn.LayerNorm) ----
    mu1 = jnp.mean(x, axis=-1, keepdims=True)
    var1 = jnp.mean(jnp.square(x - mu1), axis=-1, keepdims=True)
    xn1 = (x - mu1) * jax.lax.rsqrt(var1 + eps) * g1_ref[...] + be1_ref[...]
    xb = xn1.astype(cdt)                     # (S, E) bf16 for the MXU

    # ---- Multi-head self attention (nn.MultiheadAttention semantics) ----
    # Per-head accumulation of the output projection:
    #   acc += (softmax(q_h k_h^T) v_h) @ Wo_h
    acc = jnp.zeros((S, E), jnp.float32)
    for h in range(num_heads):               # static unroll (num_heads is small)
        # 1/sqrt(hd) is already folded into wq/bq on the host.
        qh = jnp.dot(xb, wq_ref[h], preferred_element_type=jnp.float32) + bq_ref[h]  # (S, hd)
        kh = jnp.dot(xb, wk_ref[h], preferred_element_type=jnp.float32) + bk_ref[h]  # (S, hd)
        vh = jnp.dot(xb, wv_ref[h], preferred_element_type=jnp.float32) + bv_ref[h]  # (S, hd)
        # scores = q @ k^T without an explicit transpose (contract last dims).
        s = jax.lax.dot_general(qh.astype(cdt), kh.astype(cdt),
                                (((1,), (1,)), ((), ())),
                                preferred_element_type=jnp.float32)                   # (S, S)
        m = jnp.max(s, axis=-1, keepdims=True)
        p = jnp.exp(s - m)                                                            # f32 softmax
        p = p * pl.reciprocal(jnp.sum(p, axis=-1, keepdims=True), approx=True)
        ho = jnp.dot(p.astype(cdt), vh.astype(cdt),
                     preferred_element_type=jnp.float32)                              # (S, hd)
        acc = acc + jnp.dot(ho.astype(cdt), wo_ref[h],
                            preferred_element_type=jnp.float32)                       # (S, E)
    x = x + acc + bo_ref[...]                # residual 1 (+ out_proj bias)

    # ---- LayerNorm 2 (f32) ----
    mu2 = jnp.mean(x, axis=-1, keepdims=True)
    var2 = jnp.mean(jnp.square(x - mu2), axis=-1, keepdims=True)
    xn2 = (x - mu2) * jax.lax.rsqrt(var2 + eps) * g2_ref[...] + be2_ref[...]

    # ---- MLP: Linear -> GELU(exact erf, nn.GELU default) -> Linear; dropout=0 -> identity ----
    h1 = jnp.dot(xn2.astype(w1_ref.dtype), w1_ref[...],
                 preferred_element_type=jnp.float32) + b1_ref[...]                    # (S, H)
    g = 0.5 * h1 * (1.0 + jax.lax.erf(h1 * jnp.float32(0.7071067811865475)))
    h2 = jnp.dot(g.astype(w2_ref.dtype), w2_ref[...],
                 preferred_element_type=jnp.float32) + b2_ref[...]                    # (S, E)

    o_ref[...] = x + h2                      # residual 2


def _full_spec(shape):
    n = len(shape)
    # Constant block index => the weight tile stays resident in VMEM across the grid.
    return pl.BlockSpec(shape, lambda b, _n=n: (0,) * _n)


@functools.partial(jax.jit, static_argnames=("num_heads",))
def attention_block(x_sbe, params, num_heads):
    """x_sbe: (S, B, E) float32 (PyTorch MHA default layout). Returns (S, B, E)."""
    S, B, E = x_sbe.shape
    hd = E // num_heads
    H = params["w1t"].shape[1]
    x_bse = jnp.transpose(x_sbe, (1, 0, 2))  # single XLA transpose (see layout note)

    out = pl.pallas_call(
        functools.partial(attention_block_kernel, num_heads=num_heads),
        out_shape=jax.ShapeDtypeStruct((B, S, E), jnp.float32),
        grid=(B,),
        in_specs=[
            pl.BlockSpec((None, S, E), lambda b: (b, 0, 0)),               # x (per-batch slice)
            _full_spec((1, E)), _full_spec((1, E)),                        # ln1 gamma / beta
            _full_spec((num_heads, E, hd)), _full_spec((num_heads, 1, hd)),  # Wq (scaled), bq
            _full_spec((num_heads, E, hd)), _full_spec((num_heads, 1, hd)),  # Wk, bk
            _full_spec((num_heads, E, hd)), _full_spec((num_heads, 1, hd)),  # Wv, bv
            _full_spec((num_heads, hd, E)), _full_spec((1, E)),            # Wo (per-head slabs), bo
            _full_spec((1, E)), _full_spec((1, E)),                        # ln2 gamma / beta
            _full_spec((E, H)), _full_spec((1, H)),                        # mlp W1^T, b1
            _full_spec((H, E)), _full_spec((1, E)),                        # mlp W2^T, b2
        ],
        out_specs=pl.BlockSpec((None, S, E), lambda b: (b, 0, 0)),
        compiler_params=pltpu.CompilerParams(
            dimension_semantics=("parallel",)),
    )(x_bse,
      params["g1"], params["be1"],
      params["wq"], params["bq"], params["wk"], params["bk"],
      params["wv"], params["bv"], params["wo"], params["bo"],
      params["g2"], params["be2"],
      params["w1t"], params["b1"], params["w2t"], params["b2"])
    return jnp.transpose(out, (1, 0, 2))     # back to (S, B, E)


def init_params(key, embed_dim, hidden_dim):
    """Deterministic synthetic params in PyTorch layout (same shapes as the nn.Module)."""
    ks = jax.random.split(key, 8)
    s = 0.02
    E, H = embed_dim, hidden_dim
    return {
        "ln1_w": jnp.ones((E,), jnp.float32), "ln1_b": jnp.zeros((E,), jnp.float32),
        "in_proj_w": s * jax.random.normal(ks[0], (3 * E, E), jnp.float32),
        "in_proj_b": s * jax.random.normal(ks[1], (3 * E,), jnp.float32),
        "out_proj_w": s * jax.random.normal(ks[2], (E, E), jnp.float32),
        "out_proj_b": s * jax.random.normal(ks[3], (E,), jnp.float32),
        "ln2_w": jnp.ones((E,), jnp.float32), "ln2_b": jnp.zeros((E,), jnp.float32),
        "fc1_w": s * jax.random.normal(ks[4], (H, E), jnp.float32),
        "fc1_b": s * jax.random.normal(ks[5], (H,), jnp.float32),
        "fc2_w": s * jax.random.normal(ks[6], (E, H), jnp.float32),
        "fc2_b": s * jax.random.normal(ks[7], (E,), jnp.float32),
    }


def prepare_params(p, num_heads, compute_dtype=jnp.bfloat16):
    """One-time host-side prep: transpose weights for lane-contiguous MXU feeds,
    split attention weights per head, fold the q scale, cast matmul weights to bf16."""
    E = p["ln1_w"].shape[0]
    H = p["fc1_w"].shape[0]
    hd = E // num_heads
    scale = 1.0 / float(hd) ** 0.5

    wq, wk, wv = (p["in_proj_w"][i * E:(i + 1) * E] for i in range(3))   # (E, E) each
    bq, bk, bv = (p["in_proj_b"][i * E:(i + 1) * E] for i in range(3))   # (E,)  each
    wq = wq * scale          # PyTorch MHA scales q by 1/sqrt(hd); fold it into the weights
    bq = bq * scale

    def w_heads(w):          # (E_out, E_in) -> (nh, E_in, hd): per-head, pre-transposed
        return jnp.transpose(w.reshape(num_heads, hd, E), (0, 2, 1))

    def b_heads(b):          # (E,) -> (nh, 1, hd)
        return b.reshape(num_heads, 1, hd)

    return {
        "g1": p["ln1_w"].reshape(1, E), "be1": p["ln1_b"].reshape(1, E),
        "wq": w_heads(wq).astype(compute_dtype), "bq": b_heads(bq),
        "wk": w_heads(wk).astype(compute_dtype), "bk": b_heads(bk),
        "wv": w_heads(wv).astype(compute_dtype), "bv": b_heads(bv),
        # out = concat_heads @ Wo^T + bo  =>  per-head slab Wo^T[h*hd:(h+1)*hd, :]
        "wo": p["out_proj_w"].T.reshape(num_heads, hd, E).astype(compute_dtype),
        "bo": p["out_proj_b"].reshape(1, E),
        "g2": p["ln2_w"].reshape(1, E), "be2": p["ln2_b"].reshape(1, E),
        "w1t": p["fc1_w"].T.astype(compute_dtype), "b1": p["fc1_b"].reshape(1, H),
        "w2t": p["fc2_w"].T.astype(compute_dtype), "b2": p["fc2_b"].reshape(1, E),
    }


def reference_forward(x_sbe, p, num_heads):
    """Pure-JAX f32 reference matching the PyTorch AttentionBlock forward."""
    S, B, E = x_sbe.shape
    hd = E // num_heads
    eps = 1e-5

    def ln(x, w, b):
        mu = jnp.mean(x, axis=-1, keepdims=True)
        var = jnp.mean(jnp.square(x - mu), axis=-1, keepdims=True)
        return (x - mu) / jnp.sqrt(var + eps) * w + b

    xn = ln(x_sbe, p["ln1_w"], p["ln1_b"])
    wq, wk, wv = jnp.split(p["in_proj_w"], 3, axis=0)
    bq, bk, bv = jnp.split(p["in_proj_b"], 3, axis=0)
    q = xn @ wq.T + bq
    k = xn @ wk.T + bk
    v = xn @ wv.T + bv

    def split_heads(t):      # (S, B, E) -> (B, nh, S, hd), PyTorch head split
        return jnp.transpose(t.reshape(S, B, num_heads, hd), (1, 2, 0, 3))

    qh, kh, vh = split_heads(q), split_heads(k), split_heads(v)
    scores = jnp.einsum("bhqd,bhkd->bhqk", qh, kh) / jnp.sqrt(jnp.float32(hd))
    probs = jax.nn.softmax(scores, axis=-1)
    ctx = jnp.einsum("bhqk,bhkd->bhqd", probs, vh)                      # (B, nh, S, hd)
    ctx = jnp.transpose(ctx, (2, 0, 1, 3)).reshape(S, B, E)             # concat heads
    attn_out = ctx @ p["out_proj_w"].T + p["out_proj_b"]

    x = x_sbe + attn_out
    xn2 = ln(x, p["ln2_w"], p["ln2_b"])
    h1 = xn2 @ p["fc1_w"].T + p["fc1_b"]
    g = 0.5 * h1 * (1.0 + jax.lax.erf(h1 * jnp.float32(0.7071067811865475)))
    h2 = g @ p["fc2_w"].T + p["fc2_b"]
    return x + h2


if __name__ == "__main__":
    # Small shapes consistent with the module: seq=8, batch=2, embed=32, hidden=64, heads=4
    S, B, E, H, NH = 8, 2, 32, 64, 4

    key = jax.random.PRNGKey(0)
    kx, kp = jax.random.split(key)
    x = jax.random.normal(kx, (S, B, E), jnp.float32)   # (seq, batch, embed), PyTorch MHA layout
    torch_layout_params = init_params(kp, E, H)
    kparams = prepare_params(torch_layout_params, NH)

    y = attention_block(x, kparams, num_heads=NH)
    jax.block_until_ready(y)
    assert y.shape == (S, B, E) and y.dtype == jnp.float32
    assert bool(jnp.all(jnp.isfinite(y)))

    # Correctness vs. pure-JAX f32 reference (kernel uses bf16 MXU feeds + EUP
    # approx reciprocal, so allow a loose tolerance).
    y_ref = reference_forward(x, torch_layout_params, NH)
    max_err = float(jnp.max(jnp.abs(y - y_ref)))
    assert max_err < 5e-2, f"kernel/reference mismatch: max abs err {max_err}"

    print("KERNEL_OK")
</pallas_src>

<mosaic_0001>
module attributes {stable_mosaic.version = 11 : i64} {
  func.func @attention_block_kernel(%arg0: i32, %arg1: memref<1x8x32xf32, #tpu.memory_space<vmem>>, %arg2: memref<1x32xf32, #tpu.memory_space<vmem>>, %arg3: memref<1x32xf32, #tpu.memory_space<vmem>>, %arg4: memref<4x32x8xbf16, #tpu.memory_space<vmem>>, %arg5: memref<4x1x8xf32, #tpu.memory_space<vmem>>, %arg6: memref<4x32x8xbf16, #tpu.memory_space<vmem>>, %arg7: memref<4x1x8xf32, #tpu.memory_space<vmem>>, %arg8: memref<4x32x8xbf16, #tpu.memory_space<vmem>>, %arg9: memref<4x1x8xf32, #tpu.memory_space<vmem>>, %arg10: memref<4x8x32xbf16, #tpu.memory_space<vmem>>, %arg11: memref<1x32xf32, #tpu.memory_space<vmem>>, %arg12: memref<1x32xf32, #tpu.memory_space<vmem>>, %arg13: memref<1x32xf32, #tpu.memory_space<vmem>>, %arg14: memref<32x64xbf16, #tpu.memory_space<vmem>>, %arg15: memref<1x64xf32, #tpu.memory_space<vmem>>, %arg16: memref<64x32xbf16, #tpu.memory_space<vmem>>, %arg17: memref<1x32xf32, #tpu.memory_space<vmem>>, %arg18: memref<1x8x32xf32, #tpu.memory_space<vmem>>) attributes {dimension_semantics = [#tpu.dimension_semantics<parallel>], iteration_bounds = array<i64: 2>, scalar_prefetch = 0 : i64, scratch_operands = 0 : i64, tpu.core_type = #tpu.core_type<tc>, window_params = [{transform_indices = @transform_0, window_bounds = array<i64: 1, 8, 32>}, {pipeline_mode = #tpu.pipeline_mode<synchronous>, transform_indices = @transform_1, window_bounds = array<i64: 1, 32>}, {pipeline_mode = #tpu.pipeline_mode<synchronous>, transform_indices = @transform_2, window_bounds = array<i64: 1, 32>}, {pipeline_mode = #tpu.pipeline_mode<synchronous>, transform_indices = @transform_3, window_bounds = array<i64: 4, 32, 8>}, {pipeline_mode = #tpu.pipeline_mode<synchronous>, transform_indices = @transform_4, window_bounds = array<i64: 4, 1, 8>}, {pipeline_mode = #tpu.pipeline_mode<synchronous>, transform_indices = @transform_5, window_bounds = array<i64: 4, 32, 8>}, {pipeline_mode = #tpu.pipeline_mode<synchronous>, transform_indices = @transform_6, window_bounds = array<i64: 4, 1, 8>}, {pipeline_mode = #tpu.pipeline_mode<synchronous>, transform_indices = @transform_7, window_bounds = array<i64: 4, 32, 8>}, {pipeline_mode = #tpu.pipeline_mode<synchronous>, transform_indices = @transform_8, window_bounds = array<i64: 4, 1, 8>}, {pipeline_mode = #tpu.pipeline_mode<synchronous>, transform_indices = @transform_9, window_bounds = array<i64: 4, 8, 32>}, {pipeline_mode = #tpu.pipeline_mode<synchronous>, transform_indices = @transform_10, window_bounds = array<i64: 1, 32>}, {pipeline_mode = #tpu.pipeline_mode<synchronous>, transform_indices = @transform_11, window_bounds = array<i64: 1, 32>}, {pipeline_mode = #tpu.pipeline_mode<synchronous>, transform_indices = @transform_12, window_bounds = array<i64: 1, 32>}, {pipeline_mode = #tpu.pipeline_mode<synchronous>, transform_indices = @transform_13, window_bounds = array<i64: 32, 64>}, {pipeline_mode = #tpu.pipeline_mode<synchronous>, transform_indices = @transform_14, window_bounds = array<i64: 1, 64>}, {pipeline_mode = #tpu.pipeline_mode<synchronous>, transform_indices = @transform_15, window_bounds = array<i64: 64, 32>}, {pipeline_mode = #tpu.pipeline_mode<synchronous>, transform_indices = @transform_16, window_bounds = array<i64: 1, 32>}, {transform_indices = @transform_17, window_bounds = array<i64: 1, 8, 32>}]} {
    %c0 = arith.constant 0 : index
    %c0_0 = arith.constant 0 : index
    %c0_1 = arith.constant 0 : index
    %0 = vector.load %arg1[%c0, %c0_0, %c0_1] : memref<1x8x32xf32, #tpu.memory_space<vmem>>, vector<1x8x32xf32>
    %1 = vector.shape_cast %0 : vector<1x8x32xf32> to vector<8x32xf32>
    %cst = arith.constant dense<0.000000e+00> : vector<8xf32>
    %2 = vector.multi_reduction <add>, %1, %cst [1] : vector<8x32xf32> to vector<8xf32>
    %3 = vector.shape_cast %2 : vector<8xf32> to vector<8x1xf32>
    %cst_2 = arith.constant 3.200000e+01 : f32
    %4 = vector.broadcast %cst_2 : f32 to vector<8x1xf32>
    %5 = arith.divf %3, %4 : vector<8x1xf32>
    %6 = vector.broadcast %5 : vector<8x1xf32> to vector<8x32xf32>
    %7 = arith.subf %1, %6 : vector<8x32xf32>
    %8 = arith.mulf %7, %7 : vector<8x32xf32>
    %cst_3 = arith.constant dense<0.000000e+00> : vector<8xf32>
    %9 = vector.multi_reduction <add>, %8, %cst_3 [1] : vector<8x32xf32> to vector<8xf32>
    %10 = vector.shape_cast %9 : vector<8xf32> to vector<8x1xf32>
    %cst_4 = arith.constant 3.200000e+01 : f32
    %11 = vector.broadcast %cst_4 : f32 to vector<8x1xf32>
    %12 = arith.divf %10, %11 : vector<8x1xf32>
    %13 = vector.broadcast %5 : vector<8x1xf32> to vector<8x32xf32>
    %14 = arith.subf %1, %13 : vector<8x32xf32>
    %cst_5 = arith.constant 9.99999974E-6 : f32
    %15 = vector.broadcast %cst_5 : f32 to vector<8x1xf32>
    %16 = arith.addf %12, %15 : vector<8x1xf32>
    %17 = math.rsqrt %16 : vector<8x1xf32>
    %18 = vector.broadcast %17 : vector<8x1xf32> to vector<8x32xf32>
    %19 = arith.mulf %14, %18 : vector<8x32xf32>
    %c0_6 = arith.constant 0 : index
    %c0_7 = arith.constant 0 : index
    %20 = vector.load %arg2[%c0_6, %c0_7] : memref<1x32xf32, #tpu.memory_space<vmem>>, vector<1x32xf32>
    %21 = vector.broadcast %20 : vector<1x32xf32> to vector<8x32xf32>
    %22 = arith.mulf %19, %21 : vector<8x32xf32>
    %c0_8 = arith.constant 0 : index
    %c0_9 = arith.constant 0 : index
    %23 = vector.load %arg3[%c0_8, %c0_9] : memref<1x32xf32, #tpu.memory_space<vmem>>, vector<1x32xf32>
    %24 = vector.broadcast %23 : vector<1x32xf32> to vector<8x32xf32>
    %25 = arith.addf %22, %24 : vector<8x32xf32>
    %26 = arith.truncf %25 : vector<8x32xf32> to vector<8x32xbf16>
    %cst_10 = arith.constant 0.000000e+00 : f32
    %27 = vector.broadcast %cst_10 : f32 to vector<8x32xf32>
    %c0_11 = arith.constant 0 : index
    %c0_12 = arith.constant 0 : index
    %c0_13 = arith.constant 0 : index
    %28 = vector.load %arg4[%c0_11, %c0_12, %c0_13] : memref<4x32x8xbf16, #tpu.memory_space<vmem>>, vector<1x32x8xbf16>
    %29 = vector.shape_cast %28 : vector<1x32x8xbf16> to vector<32x8xbf16>
    %cst_14 = arith.constant dense<0.000000e+00> : vector<8x8xf32>
    %30 = tpu.matmul %26, %29, %cst_14 {dimension_numbers = #tpu.dot_dimension_numbers<[1], [0], [0], [1], [0, 0, 1, 1], [], []>} : vector<8x32xbf16>, vector<32x8xbf16>, vector<8x8xf32> -> vector<8x8xf32>
    %c0_15 = arith.constant 0 : index
    %c0_16 = arith.constant 0 : index
    %c0_17 = arith.constant 0 : index
    %31 = vector.load %arg5[%c0_15, %c0_16, %c0_17] : memref<4x1x8xf32, #tpu.memory_space<vmem>>, vector<1x1x8xf32>
    %32 = vector.shape_cast %31 : vector<1x1x8xf32> to vector<1x8xf32>
    %33 = vector.broadcast %32 : vector<1x8xf32> to vector<8x8xf32>
    %34 = arith.addf %30, %33 : vector<8x8xf32>
    %c0_18 = arith.constant 0 : index
    %c0_19 = arith.constant 0 : index
    %c0_20 = arith.constant 0 : index
    %35 = vector.load %arg6[%c0_18, %c0_19, %c0_20] : memref<4x32x8xbf16, #tpu.memory_space<vmem>>, vector<1x32x8xbf16>
    %36 = vector.shape_cast %35 : vector<1x32x8xbf16> to vector<32x8xbf16>
    %cst_21 = arith.constant dense<0.000000e+00> : vector<8x8xf32>
    %37 = tpu.matmul %26, %36, %cst_21 {dimension_numbers = #tpu.dot_dimension_numbers<[1], [0], [0], [1], [0, 0, 1, 1], [], []>} : vector<8x32xbf16>, vector<32x8xbf16>, vector<8x8xf32> -> vector<8x8xf32>
    %c0_22 = arith.constant 0 : index
    %c0_23 = arith.constant 0 : index
    %c0_24 = arith.constant 0 : index
    %38 = vector.load %arg7[%c0_22, %c0_23, %c0_24] : memref<4x1x8xf32, #tpu.memory_space<vmem>>, vector<1x1x8xf32>
    %39 = vector.shape_cast %38 : vector<1x1x8xf32> to vector<1x8xf32>
    %40 = vector.broadcast %39 : vector<1x8xf32> to vector<8x8xf32>
    %41 = arith.addf %37, %40 : vector<8x8xf32>
    %c0_25 = arith.constant 0 : index
    %c0_26 = arith.constant 0 : index
    %c0_27 = arith.constant 0 : index
    %42 = vector.load %arg8[%c0_25, %c0_26, %c0_27] : memref<4x32x8xbf16, #tpu.memory_space<vmem>>, vector<1x32x8xbf16>
    %43 = vector.shape_cast %42 : vector<1x32x8xbf16> to vector<32x8xbf16>
    %cst_28 = arith.constant dense<0.000000e+00> : vector<8x8xf32>
    %44 = tpu.matmul %26, %43, %cst_28 {dimension_numbers = #tpu.dot_dimension_numbers<[1], [0], [0], [1], [0, 0, 1, 1], [], []>} : vector<8x32xbf16>, vector<32x8xbf16>, vector<8x8xf32> -> vector<8x8xf32>
    %c0_29 = arith.constant 0 : index
    %c0_30 = arith.constant 0 : index
    %c0_31 = arith.constant 0 : index
    %45 = vector.load %arg9[%c0_29, %c0_30, %c0_31] : memref<4x1x8xf32, #tpu.memory_space<vmem>>, vector<1x1x8xf32>
    %46 = vector.shape_cast %45 : vector<1x1x8xf32> to vector<1x8xf32>
    %47 = vector.broadcast %46 : vector<1x8xf32> to vector<8x8xf32>
    %48 = arith.addf %44, %47 : vector<8x8xf32>
    %49 = arith.truncf %34 : vector<8x8xf32> to vector<8x8xbf16>
    %50 = arith.truncf %41 : vector<8x8xf32> to vector<8x8xbf16>
    %cst_32 = arith.constant dense<0.000000e+00> : vector<8x8xf32>
    %51 = tpu.matmul %49, %50, %cst_32 {dimension_numbers = #tpu.dot_dimension_numbers<[1], [1], [0], [0], [0, 0, 1, 0], [], []>} : vector<8x8xbf16>, vector<8x8xbf16>, vector<8x8xf32> -> vector<8x8xf32>
    %cst_33 = arith.constant dense<0xFF800000> : vector<8xf32>
    %52 = vector.multi_reduction <maximumf>, %51, %cst_33 [1] : vector<8x8xf32> to vector<8xf32>
    %53 = vector.shape_cast %52 : vector<8xf32> to vector<8x1xf32>
    %54 = vector.broadcast %53 : vector<8x1xf32> to vector<8x8xf32>
    %55 = arith.subf %51, %54 : vector<8x8xf32>
    %56 = math.exp %55 : vector<8x8xf32>
    %cst_34 = arith.constant dense<0.000000e+00> : vector<8xf32>
    %57 = vector.multi_reduction <add>, %56, %cst_34 [1] : vector<8x8xf32> to vector<8xf32>
    %58 = vector.shape_cast %57 : vector<8xf32> to vector<8x1xf32>
    %59 = tpu.reciprocal %58 {approx = true} : vector<8x1xf32> -> vector<8x1xf32>
    %60 = vector.broadcast %59 : vector<8x1xf32> to vector<8x8xf32>
    %61 = arith.mulf %56, %60 : vector<8x8xf32>
    %62 = arith.truncf %61 : vector<8x8xf32> to vector<8x8xbf16>
    %63 = arith.truncf %48 : vector<8x8xf32> to vector<8x8xbf16>
    %cst_35 = arith.constant dense<0.000000e+00> : vector<8x8xf32>
    %64 = tpu.matmul %62, %63, %cst_35 {dimension_numbers = #tpu.dot_dimension_numbers<[1], [0], [0], [1], [0, 0, 1, 1], [], []>} : vector<8x8xbf16>, vector<8x8xbf16>, vector<8x8xf32> -> vector<8x8xf32>
    %65 = arith.truncf %64 : vector<8x8xf32> to vector<8x8xbf16>
    %c0_36 = arith.constant 0 : index
    %c0_37 = arith.constant 0 : index
    %c0_38 = arith.constant 0 : index
    %66 = vector.load %arg10[%c0_36, %c0_37, %c0_38] : memref<4x8x32xbf16, #tpu.memory_space<vmem>>, vector<1x8x32xbf16>
    %67 = vector.shape_cast %66 : vector<1x8x32xbf16> to vector<8x32xbf16>
    %cst_39 = arith.constant dense<0.000000e+00> : vector<8x32xf32>
    %68 = tpu.matmul %65, %67, %cst_39 {dimension_numbers = #tpu.dot_dimension_numbers<[1], [0], [0], [1], [0, 0, 1, 1], [], []>} : vector<8x8xbf16>, vector<8x32xbf16>, vector<8x32xf32> -> vector<8x32xf32>
    %69 = arith.addf %27, %68 : vector<8x32xf32>
    %c1 = arith.constant 1 : index
    %c0_40 = arith.constant 0 : index
    %c0_41 = arith.constant 0 : index
    %70 = vector.load %arg4[%c1, %c0_40, %c0_41] : memref<4x32x8xbf16, #tpu.memory_space<vmem>>, vector<1x32x8xbf16>
    %71 = vector.shape_cast %70 : vector<1x32x8xbf16> to vector<32x8xbf16>
    %cst_42 = arith.constant dense<0.000000e+00> : vector<8x8xf32>
    %72 = tpu.matmul %26, %71, %cst_42 {dimension_numbers = #tpu.dot_dimension_numbers<[1], [0], [0], [1], [0, 0, 1, 1], [], []>} : vector<8x32xbf16>, vector<32x8xbf16>, vector<8x8xf32> -> vector<8x8xf32>
    %c1_43 = arith.constant 1 : index
    %c0_44 = arith.constant 0 : index
    %c0_45 = arith.constant 0 : index
    %73 = vector.load %arg5[%c1_43, %c0_44, %c0_45] : memref<4x1x8xf32, #tpu.memory_space<vmem>>, vector<1x1x8xf32>
    %74 = vector.shape_cast %73 : vector<1x1x8xf32> to vector<1x8xf32>
    %75 = vector.broadcast %74 : vector<1x8xf32> to vector<8x8xf32>
    %76 = arith.addf %72, %75 : vector<8x8xf32>
    %c1_46 = arith.constant 1 : index
    %c0_47 = arith.constant 0 : index
    %c0_48 = arith.constant 0 : index
    %77 = vector.load %arg6[%c1_46, %c0_47, %c0_48] : memref<4x32x8xbf16, #tpu.memory_space<vmem>>, vector<1x32x8xbf16>
    %78 = vector.shape_cast %77 : vector<1x32x8xbf16> to vector<32x8xbf16>
    %cst_49 = arith.constant dense<0.000000e+00> : vector<8x8xf32>
    %79 = tpu.matmul %26, %78, %cst_49 {dimension_numbers = #tpu.dot_dimension_numbers<[1], [0], [0], [1], [0, 0, 1, 1], [], []>} : vector<8x32xbf16>, vector<32x8xbf16>, vector<8x8xf32> -> vector<8x8xf32>
    %c1_50 = arith.constant 1 : index
    %c0_51 = arith.constant 0 : index
    %c0_52 = arith.constant 0 : index
    %80 = vector.load %arg7[%c1_50, %c0_51, %c0_52] : memref<4x1x8xf32, #tpu.memory_space<vmem>>, vector<1x1x8xf32>
    %81 = vector.shape_cast %80 : vector<1x1x8xf32> to vector<1x8xf32>
    %82 = vector.broadcast %81 : vector<1x8xf32> to vector<8x8xf32>
    %83 = arith.addf %79, %82 : vector<8x8xf32>
    %c1_53 = arith.constant 1 : index
    %c0_54 = arith.constant 0 : index
    %c0_55 = arith.constant 0 : index
    %84 = vector.load %arg8[%c1_53, %c0_54, %c0_55] : memref<4x32x8xbf16, #tpu.memory_space<vmem>>, vector<1x32x8xbf16>
    %85 = vector.shape_cast %84 : vector<1x32x8xbf16> to vector<32x8xbf16>
    %cst_56 = arith.constant dense<0.000000e+00> : vector<8x8xf32>
    %86 = tpu.matmul %26, %85, %cst_56 {dimension_numbers = #tpu.dot_dimension_numbers<[1], [0], [0], [1], [0, 0, 1, 1], [], []>} : vector<8x32xbf16>, vector<32x8xbf16>, vector<8x8xf32> -> vector<8x8xf32>
    %c1_57 = arith.constant 1 : index
    %c0_58 = arith.constant 0 : index
    %c0_59 = arith.constant 0 : index
    %87 = vector.load %arg9[%c1_57, %c0_58, %c0_59] : memref<4x1x8xf32, #tpu.memory_space<vmem>>, vector<1x1x8xf32>
    %88 = vector.shape_cast %87 : vector<1x1x8xf32> to vector<1x8xf32>
    %89 = vector.broadcast %88 : vector<1x8xf32> to vector<8x8xf32>
    %90 = arith.addf %86, %89 : vector<8x8xf32>
    %91 = arith.truncf %76 : vector<8x8xf32> to vector<8x8xbf16>
    %92 = arith.truncf %83 : vector<8x8xf32> to vector<8x8xbf16>
    %cst_60 = arith.constant dense<0.000000e+00> : vector<8x8xf32>
    %93 = tpu.matmul %91, %92, %cst_60 {dimension_numbers = #tpu.dot_dimension_numbers<[1], [1], [0], [0], [0, 0, 1, 0], [], []>} : vector<8x8xbf16>, vector<8x8xbf16>, vector<8x8xf32> -> vector<8x8xf32>
    %cst_61 = arith.constant dense<0xFF800000> : vector<8xf32>
    %94 = vector.multi_reduction <maximumf>, %93, %cst_61 [1] : vector<8x8xf32> to vector<8xf32>
    %95 = vector.shape_cast %94 : vector<8xf32> to vector<8x1xf32>
    %96 = vector.broadcast %95 : vector<8x1xf32> to vector<8x8xf32>
    %97 = arith.subf %93, %96 : vector<8x8xf32>
    %98 = math.exp %97 : vector<8x8xf32>
    %cst_62 = arith.constant dense<0.000000e+00> : vector<8xf32>
    %99 = vector.multi_reduction <add>, %98, %cst_62 [1] : vector<8x8xf32> to vector<8xf32>
    %100 = vector.shape_cast %99 : vector<8xf32> to vector<8x1xf32>
    %101 = tpu.reciprocal %100 {approx = true} : vector<8x1xf32> -> vector<8x1xf32>
    %102 = vector.broadcast %101 : vector<8x1xf32> to vector<8x8xf32>
    %103 = arith.mulf %98, %102 : vector<8x8xf32>
    %104 = arith.truncf %103 : vector<8x8xf32> to vector<8x8xbf16>
    %105 = arith.truncf %90 : vector<8x8xf32> to vector<8x8xbf16>
    %cst_63 = arith.constant dense<0.000000e+00> : vector<8x8xf32>
    %106 = tpu.matmul %104, %105, %cst_63 {dimension_numbers = #tpu.dot_dimension_numbers<[1], [0], [0], [1], [0, 0, 1, 1], [], []>} : vector<8x8xbf16>, vector<8x8xbf16>, vector<8x8xf32> -> vector<8x8xf32>
    %107 = arith.truncf %106 : vector<8x8xf32> to vector<8x8xbf16>
    %c1_64 = arith.constant 1 : index
    %c0_65 = arith.constant 0 : index
    %c0_66 = arith.constant 0 : index
    %108 = vector.load %arg10[%c1_64, %c0_65, %c0_66] : memref<4x8x32xbf16, #tpu.memory_space<vmem>>, vector<1x8x32xbf16>
    %109 = vector.shape_cast %108 : vector<1x8x32xbf16> to vector<8x32xbf16>
    %cst_67 = arith.constant dense<0.000000e+00> : vector<8x32xf32>
    %110 = tpu.matmul %107, %109, %cst_67 {dimension_numbers = #tpu.dot_dimension_numbers<[1], [0], [0], [1], [0, 0, 1, 1], [], []>} : vector<8x8xbf16>, vector<8x32xbf16>, vector<8x32xf32> -> vector<8x32xf32>
    %111 = arith.addf %69, %110 : vector<8x32xf32>
    %c2 = arith.constant 2 : index
    %c0_68 = arith.constant 0 : index
    %c0_69 = arith.constant 0 : index
    %112 = vector.load %arg4[%c2, %c0_68, %c0_69] : memref<4x32x8xbf16, #tpu.memory_space<vmem>>, vector<1x32x8xbf16>
    %113 = vector.shape_cast %112 : vector<1x32x8xbf16> to vector<32x8xbf16>
    %cst_70 = arith.constant dense<0.000000e+00> : vector<8x8xf32>
    %114 = tpu.matmul %26, %113, %cst_70 {dimension_numbers = #tpu.dot_dimension_numbers<[1], [0], [0], [1], [0, 0, 1, 1], [], []>} : vector<8x32xbf16>, vector<32x8xbf16>, vector<8x8xf32> -> vector<8x8xf32>
    %c2_71 = arith.constant 2 : index
    %c0_72 = arith.constant 0 : index
    %c0_73 = arith.constant 0 : index
    %115 = vector.load %arg5[%c2_71, %c0_72, %c0_73] : memref<4x1x8xf32, #tpu.memory_space<vmem>>, vector<1x1x8xf32>
    %116 = vector.shape_cast %115 : vector<1x1x8xf32> to vector<1x8xf32>
    %117 = vector.broadcast %116 : vector<1x8xf32> to vector<8x8xf32>
    %118 = arith.addf %114, %117 : vector<8x8xf32>
    %c2_74 = arith.constant 2 : index
    %c0_75 = arith.constant 0 : index
    %c0_76 = arith.constant 0 : index
    %119 = vector.load %arg6[%c2_74, %c0_75, %c0_76] : memref<4x32x8xbf16, #tpu.memory_space<vmem>>, vector<1x32x8xbf16>
    %120 = vector.shape_cast %119 : vector<1x32x8xbf16> to vector<32x8xbf16>
    %cst_77 = arith.constant dense<0.000000e+00> : vector<8x8xf32>
    %121 = tpu.matmul %26, %120, %cst_77 {dimension_numbers = #tpu.dot_dimension_numbers<[1], [0], [0], [1], [0, 0, 1, 1], [], []>} : vector<8x32xbf16>, vector<32x8xbf16>, vector<8x8xf32> -> vector<8x8xf32>
    %c2_78 = arith.constant 2 : index
    %c0_79 = arith.constant 0 : index
    %c0_80 = arith.constant 0 : index
    %122 = vector.load %arg7[%c2_78, %c0_79, %c0_80] : memref<4x1x8xf32, #tpu.memory_space<vmem>>, vector<1x1x8xf32>
    %123 = vector.shape_cast %122 : vector<1x1x8xf32> to vector<1x8xf32>
    %124 = vector.broadcast %123 : vector<1x8xf32> to vector<8x8xf32>
    %125 = arith.addf %121, %124 : vector<8x8xf32>
    %c2_81 = arith.constant 2 : index
    %c0_82 = arith.constant 0 : index
    %c0_83 = arith.constant 0 : index
    %126 = vector.load %arg8[%c2_81, %c0_82, %c0_83] : memref<4x32x8xbf16, #tpu.memory_space<vmem>>, vector<1x32x8xbf16>
    %127 = vector.shape_cast %126 : vector<1x32x8xbf16> to vector<32x8xbf16>
    %cst_84 = arith.constant dense<0.000000e+00> : vector<8x8xf32>
    %128 = tpu.matmul %26, %127, %cst_84 {dimension_numbers = #tpu.dot_dimension_numbers<[1], [0], [0], [1], [0, 0, 1, 1], [], []>} : vector<8x32xbf16>, vector<32x8xbf16>, vector<8x8xf32> -> vector<8x8xf32>
    %c2_85 = arith.constant 2 : index
    %c0_86 = arith.constant 0 : index
    %c0_87 = arith.constant 0 : index
    %129 = vector.load %arg9[%c2_85, %c0_86, %c0_87] : memref<4x1x8xf32, #tpu.memory_space<vmem>>, vector<1x1x8xf32>
    %130 = vector.shape_cast %129 : vector<1x1x8xf32> to vector<1x8xf32>
    %131 = vector.broadcast %130 : vector<1x8xf32> to vector<8x8xf32>
    %132 = arith.addf %128, %131 : vector<8x8xf32>
    %133 = arith.truncf %118 : vector<8x8xf32> to vector<8x8xbf16>
    %134 = arith.truncf %125 : vector<8x8xf32> to vector<8x8xbf16>
    %cst_88 = arith.constant dense<0.000000e+00> : vector<8x8xf32>
    %135 = tpu.matmul %133, %134, %cst_88 {dimension_numbers = #tpu.dot_dimension_numbers<[1], [1], [0], [0], [0, 0, 1, 0], [], []>} : vector<8x8xbf16>, vector<8x8xbf16>, vector<8x8xf32> -> vector<8x8xf32>
    %cst_89 = arith.constant dense<0xFF800000> : vector<8xf32>
    %136 = vector.multi_reduction <maximumf>, %135, %cst_89 [1] : vector<8x8xf32> to vector<8xf32>
    %137 = vector.shape_cast %136 : vector<8xf32> to vector<8x1xf32>
    %138 = vector.broadcast %137 : vector<8x1xf32> to vector<8x8xf32>
    %139 = arith.subf %135, %138 : vector<8x8xf32>
    %140 = math.exp %139 : vector<8x8xf32>
    %cst_90 = arith.constant dense<0.000000e+00> : vector<8xf32>
    %141 = vector.multi_reduction <add>, %140, %cst_90 [1] : vector<8x8xf32> to vector<8xf32>
    %142 = vector.shape_cast %141 : vector<8xf32> to vector<8x1xf32>
    %143 = tpu.reciprocal %142 {approx = true} : vector<8x1xf32> -> vector<8x1xf32>
    %144 = vector.broadcast %143 : vector<8x1xf32> to vector<8x8xf32>
    %145 = arith.mulf %140, %144 : vector<8x8xf32>
    %146 = arith.truncf %145 : vector<8x8xf32> to vector<8x8xbf16>
    %147 = arith.truncf %132 : vector<8x8xf32> to vector<8x8xbf16>
    %cst_91 = arith.constant dense<0.000000e+00> : vector<8x8xf32>
    %148 = tpu.matmul %146, %147, %cst_91 {dimension_numbers = #tpu.dot_dimension_numbers<[1], [0], [0], [1], [0, 0, 1, 1], [], []>} : vector<8x8xbf16>, vector<8x8xbf16>, vector<8x8xf32> -> vector<8x8xf32>
    %149 = arith.truncf %148 : vector<8x8xf32> to vector<8x8xbf16>
    %c2_92 = arith.constant 2 : index
    %c0_93 = arith.constant 0 : index
    %c0_94 = arith.constant 0 : index
    %150 = vector.load %arg10[%c2_92, %c0_93, %c0_94] : memref<4x8x32xbf16, #tpu.memory_space<vmem>>, vector<1x8x32xbf16>
    %151 = vector.shape_cast %150 : vector<1x8x32xbf16> to vector<8x32xbf16>
    %cst_95 = arith.constant dense<0.000000e+00> : vector<8x32xf32>
    %152 = tpu.matmul %149, %151, %cst_95 {dimension_numbers = #tpu.dot_dimension_numbers<[1], [0], [0], [1], [0, 0, 1, 1], [], []>} : vector<8x8xbf16>, vector<8x32xbf16>, vector<8x32xf32> -> vector<8x32xf32>
    %153 = arith.addf %111, %152 : vector<8x32xf32>
    %c3 = arith.constant 3 : index
    %c0_96 = arith.constant 0 : index
    %c0_97 = arith.constant 0 : index
    %154 = vector.load %arg4[%c3, %c0_96, %c0_97] : memref<4x32x8xbf16, #tpu.memory_space<vmem>>, vector<1x32x8xbf16>
    %155 = vector.shape_cast %154 : vector<1x32x8xbf16> to vector<32x8xbf16>
    %cst_98 = arith.constant dense<0.000000e+00> : vector<8x8xf32>
    %156 = tpu.matmul %26, %155, %cst_98 {dimension_numbers = #tpu.dot_dimension_numbers<[1], [0], [0], [1], [0, 0, 1, 1], [], []>} : vector<8x32xbf16>, vector<32x8xbf16>, vector<8x8xf32> -> vector<8x8xf32>
    %c3_99 = arith.constant 3 : index
    %c0_100 = arith.constant 0 : index
    %c0_101 = arith.constant 0 : index
    %157 = vector.load %arg5[%c3_99, %c0_100, %c0_101] : memref<4x1x8xf32, #tpu.memory_space<vmem>>, vector<1x1x8xf32>
    %158 = vector.shape_cast %157 : vector<1x1x8xf32> to vector<1x8xf32>
    %159 = vector.broadcast %158 : vector<1x8xf32> to vector<8x8xf32>
    %160 = arith.addf %156, %159 : vector<8x8xf32>
    %c3_102 = arith.constant 3 : index
    %c0_103 = arith.constant 0 : index
    %c0_104 = arith.constant 0 : index
    %161 = vector.load %arg6[%c3_102, %c0_103, %c0_104] : memref<4x32x8xbf16, #tpu.memory_space<vmem>>, vector<1x32x8xbf16>
    %162 = vector.shape_cast %161 : vector<1x32x8xbf16> to vector<32x8xbf16>
    %cst_105 = arith.constant dense<0.000000e+00> : vector<8x8xf32>
    %163 = tpu.matmul %26, %162, %cst_105 {dimension_numbers = #tpu.dot_dimension_numbers<[1], [0], [0], [1], [0, 0, 1, 1], [], []>} : vector<8x32xbf16>, vector<32x8xbf16>, vector<8x8xf32> -> vector<8x8xf32>
    %c3_106 = arith.constant 3 : index
    %c0_107 = arith.constant 0 : index
    %c0_108 = arith.constant 0 : index
    %164 = vector.load %arg7[%c3_106, %c0_107, %c0_108] : memref<4x1x8xf32, #tpu.memory_space<vmem>>, vector<1x1x8xf32>
    %165 = vector.shape_cast %164 : vector<1x1x8xf32> to vector<1x8xf32>
    %166 = vector.broadcast %165 : vector<1x8xf32> to vector<8x8xf32>
    %167 = arith.addf %163, %166 : vector<8x8xf32>
    %c3_109 = arith.constant 3 : index
    %c0_110 = arith.constant 0 : index
    %c0_111 = arith.constant 0 : index
    %168 = vector.load %arg8[%c3_109, %c0_110, %c0_111] : memref<4x32x8xbf16, #tpu.memory_space<vmem>>, vector<1x32x8xbf16>
    %169 = vector.shape_cast %168 : vector<1x32x8xbf16> to vector<32x8xbf16>
    %cst_112 = arith.constant dense<0.000000e+00> : vector<8x8xf32>
    %170 = tpu.matmul %26, %169, %cst_112 {dimension_numbers = #tpu.dot_dimension_numbers<[1], [0], [0], [1], [0, 0, 1, 1], [], []>} : vector<8x32xbf16>, vector<32x8xbf16>, vector<8x8xf32> -> vector<8x8xf32>
    %c3_113 = arith.constant 3 : index
    %c0_114 = arith.constant 0 : index
    %c0_115 = arith.constant 0 : index
    %171 = vector.load %arg9[%c3_113, %c0_114, %c0_115] : memref<4x1x8xf32, #tpu.memory_space<vmem>>, vector<1x1x8xf32>
    %172 = vector.shape_cast %171 : vector<1x1x8xf32> to vector<1x8xf32>
    %173 = vector.broadcast %172 : vector<1x8xf32> to vector<8x8xf32>
    %174 = arith.addf %170, %173 : vector<8x8xf32>
    %175 = arith.truncf %160 : vector<8x8xf32> to vector<8x8xbf16>
    %176 = arith.truncf %167 : vector<8x8xf32> to vector<8x8xbf16>
    %cst_116 = arith.constant dense<0.000000e+00> : vector<8x8xf32>
    %177 = tpu.matmul %175, %176, %cst_116 {dimension_numbers = #tpu.dot_dimension_numbers<[1], [1], [0], [0], [0, 0, 1, 0], [], []>} : vector<8x8xbf16>, vector<8x8xbf16>, vector<8x8xf32> -> vector<8x8xf32>
    %cst_117 = arith.constant dense<0xFF800000> : vector<8xf32>
    %178 = vector.multi_reduction <maximumf>, %177, %cst_117 [1] : vector<8x8xf32> to vector<8xf32>
    %179 = vector.shape_cast %178 : vector<8xf32> to vector<8x1xf32>
    %180 = vector.broadcast %179 : vector<8x1xf32> to vector<8x8xf32>
    %181 = arith.subf %177, %180 : vector<8x8xf32>
    %182 = math.exp %181 : vector<8x8xf32>
    %cst_118 = arith.constant dense<0.000000e+00> : vector<8xf32>
    %183 = vector.multi_reduction <add>, %182, %cst_118 [1] : vector<8x8xf32> to vector<8xf32>
    %184 = vector.shape_cast %183 : vector<8xf32> to vector<8x1xf32>
    %185 = tpu.reciprocal %184 {approx = true} : vector<8x1xf32> -> vector<8x1xf32>
    %186 = vector.broadcast %185 : vector<8x1xf32> to vector<8x8xf32>
    %187 = arith.mulf %182, %186 : vector<8x8xf32>
    %188 = arith.truncf %187 : vector<8x8xf32> to vector<8x8xbf16>
    %189 = arith.truncf %174 : vector<8x8xf32> to vector<8x8xbf16>
    %cst_119 = arith.constant dense<0.000000e+00> : vector<8x8xf32>
    %190 = tpu.matmul %188, %189, %cst_119 {dimension_numbers = #tpu.dot_dimension_numbers<[1], [0], [0], [1], [0, 0, 1, 1], [], []>} : vector<8x8xbf16>, vector<8x8xbf16>, vector<8x8xf32> -> vector<8x8xf32>
    %191 = arith.truncf %190 : vector<8x8xf32> to vector<8x8xbf16>
    %c3_120 = arith.constant 3 : index
    %c0_121 = arith.constant 0 : index
    %c0_122 = arith.constant 0 : index
    %192 = vector.load %arg10[%c3_120, %c0_121, %c0_122] : memref<4x8x32xbf16, #tpu.memory_space<vmem>>, vector<1x8x32xbf16>
    %193 = vector.shape_cast %192 : vector<1x8x32xbf16> to vector<8x32xbf16>
    %cst_123 = arith.constant dense<0.000000e+00> : vector<8x32xf32>
    %194 = tpu.matmul %191, %193, %cst_123 {dimension_numbers = #tpu.dot_dimension_numbers<[1], [0], [0], [1], [0, 0, 1, 1], [], []>} : vector<8x8xbf16>, vector<8x32xbf16>, vector<8x32xf32> -> vector<8x32xf32>
    %195 = arith.addf %153, %194 : vector<8x32xf32>
    %196 = arith.addf %1, %195 : vector<8x32xf32>
    %c0_124 = arith.constant 0 : index
    %c0_125 = arith.constant 0 : index
    %197 = vector.load %arg11[%c0_124, %c0_125] : memref<1x32xf32, #tpu.memory_space<vmem>>, vector<1x32xf32>
    %198 = vector.broadcast %197 : vector<1x32xf32> to vector<8x32xf32>
    %199 = arith.addf %196, %198 : vector<8x32xf32>
    %cst_126 = arith.constant dense<0.000000e+00> : vector<8xf32>
    %200 = vector.multi_reduction <add>, %199, %cst_126 [1] : vector<8x32xf32> to vector<8xf32>
    %201 = vector.shape_cast %200 : vector<8xf32> to vector<8x1xf32>
    %cst_127 = arith.constant 3.200000e+01 : f32
    %202 = vector.broadcast %cst_127 : f32 to vector<8x1xf32>
    %203 = arith.divf %201, %202 : vector<8x1xf32>
    %204 = vector.broadcast %203 : vector<8x1xf32> to vector<8x32xf32>
    %205 = arith.subf %199, %204 : vector<8x32xf32>
    %206 = arith.mulf %205, %205 : vector<8x32xf32>
    %cst_128 = arith.constant dense<0.000000e+00> : vector<8xf32>
    %207 = vector.multi_reduction <add>, %206, %cst_128 [1] : vector<8x32xf32> to vector<8xf32>
    %208 = vector.shape_cast %207 : vector<8xf32> to vector<8x1xf32>
    %cst_129 = arith.constant 3.200000e+01 : f32
    %209 = vector.broadcast %cst_129 : f32 to vector<8x1xf32>
    %210 = arith.divf %208, %209 : vector<8x1xf32>
    %211 = vector.broadcast %203 : vector<8x1xf32> to vector<8x32xf32>
    %212 = arith.subf %199, %211 : vector<8x32xf32>
    %cst_130 = arith.constant 9.99999974E-6 : f32
    %213 = vector.broadcast %cst_130 : f32 to vector<8x1xf32>
    %214 = arith.addf %210, %213 : vector<8x1xf32>
    %215 = math.rsqrt %214 : vector<8x1xf32>
    %216 = vector.broadcast %215 : vector<8x1xf32> to vector<8x32xf32>
    %217 = arith.mulf %212, %216 : vector<8x32xf32>
    %c0_131 = arith.constant 0 : index
    %c0_132 = arith.constant 0 : index
    %218 = vector.load %arg12[%c0_131, %c0_132] : memref<1x32xf32, #tpu.memory_space<vmem>>, vector<1x32xf32>
    %219 = vector.broadcast %218 : vector<1x32xf32> to vector<8x32xf32>
    %220 = arith.mulf %217, %219 : vector<8x32xf32>
    %c0_133 = arith.constant 0 : index
    %c0_134 = arith.constant 0 : index
    %221 = vector.load %arg13[%c0_133, %c0_134] : memref<1x32xf32, #tpu.memory_space<vmem>>, vector<1x32xf32>
    %222 = vector.broadcast %221 : vector<1x32xf32> to vector<8x32xf32>
    %223 = arith.addf %220, %222 : vector<8x32xf32>
    %224 = arith.truncf %223 : vector<8x32xf32> to vector<8x32xbf16>
    %c0_135 = arith.constant 0 : index
    %c0_136 = arith.constant 0 : index
    %225 = vector.load %arg14[%c0_135, %c0_136] : memref<32x64xbf16, #tpu.memory_space<vmem>>, vector<32x64xbf16>
    %cst_137 = arith.constant dense<0.000000e+00> : vector<8x64xf32>
    %226 = tpu.matmul %224, %225, %cst_137 {dimension_numbers = #tpu.dot_dimension_numbers<[1], [0], [0], [1], [0, 0, 1, 1], [], []>} : vector<8x32xbf16>, vector<32x64xbf16>, vector<8x64xf32> -> vector<8x64xf32>
    %c0_138 = arith.constant 0 : index
    %c0_139 = arith.constant 0 : index
    %227 = vector.load %arg15[%c0_138, %c0_139] : memref<1x64xf32, #tpu.memory_space<vmem>>, vector<1x64xf32>
    %228 = vector.broadcast %227 : vector<1x64xf32> to vector<8x64xf32>
    %229 = arith.addf %226, %228 : vector<8x64xf32>
    %cst_140 = arith.constant 5.000000e-01 : f32
    %230 = vector.broadcast %cst_140 : f32 to vector<8x64xf32>
    %231 = arith.mulf %230, %229 : vector<8x64xf32>
    %cst_141 = arith.constant 0.707106769 : f32
    %232 = vector.broadcast %cst_141 : f32 to vector<8x64xf32>
    %233 = arith.mulf %229, %232 : vector<8x64xf32>
    %234 = math.erf %233 : vector<8x64xf32>
    %cst_142 = arith.constant 1.000000e+00 : f32
    %235 = vector.broadcast %cst_142 : f32 to vector<8x64xf32>
    %236 = arith.addf %235, %234 : vector<8x64xf32>
    %237 = arith.mulf %231, %236 : vector<8x64xf32>
    %238 = arith.truncf %237 : vector<8x64xf32> to vector<8x64xbf16>
    %c0_143 = arith.constant 0 : index
    %c0_144 = arith.constant 0 : index
    %239 = vector.load %arg16[%c0_143, %c0_144] : memref<64x32xbf16, #tpu.memory_space<vmem>>, vector<64x32xbf16>
    %cst_145 = arith.constant dense<0.000000e+00> : vector<8x32xf32>
    %240 = tpu.matmul %238, %239, %cst_145 {dimension_numbers = #tpu.dot_dimension_numbers<[1], [0], [0], [1], [0, 0, 1, 1], [], []>} : vector<8x64xbf16>, vector<64x32xbf16>, vector<8x32xf32> -> vector<8x32xf32>
    %c0_146 = arith.constant 0 : index
    %c0_147 = arith.constant 0 : index
    %241 = vector.load %arg17[%c0_146, %c0_147] : memref<1x32xf32, #tpu.memory_space<vmem>>, vector<1x32xf32>
    %242 = vector.broadcast %241 : vector<1x32xf32> to vector<8x32xf32>
    %243 = arith.addf %240, %242 : vector<8x32xf32>
    %244 = arith.addf %199, %243 : vector<8x32xf32>
    %c0_148 = arith.constant 0 : index
    %c0_149 = arith.constant 0 : index
    %c0_150 = arith.constant 0 : index
    %245 = vector.load %arg18[%c0_148, %c0_149, %c0_150] : memref<1x8x32xf32, #tpu.memory_space<vmem>>, vector<1x8x32xf32>
    %246 = vector.shape_cast %245 : vector<1x8x32xf32> to vector<8x32xf32>
    %247 = vector.shape_cast %244 : vector<8x32xf32> to vector<1x8x32xf32>
    tpu.vector_store %arg18[%c0_148, %c0_149, %c0_150], %247 {strides = array<i32>} : memref<1x8x32xf32, #tpu.memory_space<vmem>>, vector<1x8x32xf32>,
    return
  }
  func.func @transform_0(%arg0: i32) -> (i32, i32, i32) {
    %c0_i32 = arith.constant 0 : i32
    %c0_i32_0 = arith.constant 0 : i32
    %c0_i32_1 = arith.constant 0 : i32
    return %arg0, %c0_i32, %c0_i32_0 : i32, i32, i32
  }
  func.func @transform_1(%arg0: i32) -> (i32, i32) {
    %c0_i32 = arith.constant 0 : i32
    %c0_i32_0 = arith.constant 0 : i32
    %c0_i32_1 = arith.constant 0 : i32
    return %c0_i32, %c0_i32_0 : i32, i32
  }
  func.func @transform_2(%arg0: i32) -> (i32, i32) {
    %c0_i32 = arith.constant 0 : i32
    %c0_i32_0 = arith.constant 0 : i32
    %c0_i32_1 = arith.constant 0 : i32
    return %c0_i32, %c0_i32_0 : i32, i32
  }
  func.func @transform_3(%arg0: i32) -> (i32, i32, i32) {
    %c0_i32 = arith.constant 0 : i32
    %c0_i32_0 = arith.constant 0 : i32
    %c0_i32_1 = arith.constant 0 : i32
    %c0_i32_2 = arith.constant 0 : i32
    return %c0_i32, %c0_i32_0, %c0_i32_1 : i32, i32, i32
  }
  func.func @transform_4(%arg0: i32) -> (i32, i32, i32) {
    %c0_i32 = arith.constant 0 : i32
    %c0_i32_0 = arith.constant 0 : i32
    %c0_i32_1 = arith.constant 0 : i32
    %c0_i32_2 = arith.constant 0 : i32
    return %c0_i32, %c0_i32_0, %c0_i32_1 : i32, i32, i32
  }
  func.func @transform_5(%arg0: i32) -> (i32, i32, i32) {
    %c0_i32 = arith.constant 0 : i32
    %c0_i32_0 = arith.constant 0 : i32
    %c0_i32_1 = arith.constant 0 : i32
    %c0_i32_2 = arith.constant 0 : i32
    return %c0_i32, %c0_i32_0, %c0_i32_1 : i32, i32, i32
  }
  func.func @transform_6(%arg0: i32) -> (i32, i32, i32) {
    %c0_i32 = arith.constant 0 : i32
    %c0_i32_0 = arith.constant 0 : i32
    %c0_i32_1 = arith.constant 0 : i32
    %c0_i32_2 = arith.constant 0 : i32
    return %c0_i32, %c0_i32_0, %c0_i32_1 : i32, i32, i32
  }
  func.func @transform_7(%arg0: i32) -> (i32, i32, i32) {
    %c0_i32 = arith.constant 0 : i32
    %c0_i32_0 = arith.constant 0 : i32
    %c0_i32_1 = arith.constant 0 : i32
    %c0_i32_2 = arith.constant 0 : i32
    return %c0_i32, %c0_i32_0, %c0_i32_1 : i32, i32, i32
  }
  func.func @transform_8(%arg0: i32) -> (i32, i32, i32) {
    %c0_i32 = arith.constant 0 : i32
    %c0_i32_0 = arith.constant 0 : i32
    %c0_i32_1 = arith.constant 0 : i32
    %c0_i32_2 = arith.constant 0 : i32
    return %c0_i32, %c0_i32_0, %c0_i32_1 : i32, i32, i32
  }
  func.func @transform_9(%arg0: i32) -> (i32, i32, i32) {
    %c0_i32 = arith.constant 0 : i32
    %c0_i32_0 = arith.constant 0 : i32
    %c0_i32_1 = arith.constant 0 : i32
    %c0_i32_2 = arith.constant 0 : i32
    return %c0_i32, %c0_i32_0, %c0_i32_1 : i32, i32, i32
  }
  func.func @transform_10(%arg0: i32) -> (i32, i32) {
    %c0_i32 = arith.constant 0 : i32
    %c0_i32_0 = arith.constant 0 : i32
    %c0_i32_1 = arith.constant 0 : i32
    return %c0_i32, %c0_i32_0 : i32, i32
  }
  func.func @transform_11(%arg0: i32) -> (i32, i32) {
    %c0_i32 = arith.constant 0 : i32
    %c0_i32_0 = arith.constant 0 : i32
    %c0_i32_1 = arith.constant 0 : i32
    return %c0_i32, %c0_i32_0 : i32, i32
  }
  func.func @transform_12(%arg0: i32) -> (i32, i32) {
    %c0_i32 = arith.constant 0 : i32
    %c0_i32_0 = arith.constant 0 : i32
    %c0_i32_1 = arith.constant 0 : i32
    return %c0_i32, %c0_i32_0 : i32, i32
  }
  func.func @transform_13(%arg0: i32) -> (i32, i32) {
    %c0_i32 = arith.constant 0 : i32
    %c0_i32_0 = arith.constant 0 : i32
    %c0_i32_1 = arith.constant 0 : i32
    return %c0_i32, %c0_i32_0 : i32, i32
  }
  func.func @transform_14(%arg0: i32) -> (i32, i32) {
    %c0_i32 = arith.constant 0 : i32
    %c0_i32_0 = arith.constant 0 : i32
    %c0_i32_1 = arith.constant 0 : i32
    return %c0_i32, %c0_i32_0 : i32, i32
  }
  func.func @transform_15(%arg0: i32) -> (i32, i32) {
    %c0_i32 = arith.constant 0 : i32
    %c0_i32_0 = arith.constant 0 : i32
    %c0_i32_1 = arith.constant 0 : i32
    return %c0_i32, %c0_i32_0 : i32, i32
  }
  func.func @transform_16(%arg0: i32) -> (i32, i32) {
    %c0_i32 = arith.constant 0 : i32
    %c0_i32_0 = arith.constant 0 : i32
    %c0_i32_1 = arith.constant 0 : i32
    return %c0_i32, %c0_i32_0 : i32, i32
  }
  func.func @transform_17(%arg0: i32) -> (i32, i32, i32) {
    %c0_i32 = arith.constant 0 : i32
    %c0_i32_0 = arith.constant 0 : i32
    %c0_i32_1 = arith.constant 0 : i32
    return %arg0, %c0_i32, %c0_i32_0 : i32, i32, i32
  }
}

</mosaic_0001>

<llo_original>
// kernel: attention_block.1
$region0: #{attention_block.1}
  #allocation0 [shape = 'u32[]', space=smem, size = 0x4, offset = 0x4, fixed_abs, tag = 'smem constant byte address 0x4 - core index']
  #allocation1 [shape = 'u32[144,128]{1,0:T(1,128)}', space=vmem, size = 0x12000, scoped, tag = 'internal scratch']
  %s0 = inlined_call_operand.vmem [shape: f32[2,8,32], index: 0, kind: input, shape index: {}]
  %s1 = inlined_call_operand.vmem [shape: f32[1,32], index: 1, kind: input, shape index: {}]
  %s2 = inlined_call_operand.vmem [shape: f32[1,32], index: 2, kind: input, shape index: {}]
  %s3 = inlined_call_operand.vmem [shape: bf16[4,32,8], index: 3, kind: input, shape index: {}]
  %s4 = inlined_call_operand.vmem [shape: f32[4,1,8], index: 4, kind: input, shape index: {}]
  %s5 = inlined_call_operand.vmem [shape: bf16[4,32,8], index: 5, kind: input, shape index: {}]
  %s6 = inlined_call_operand.vmem [shape: f32[4,1,8], index: 6, kind: input, shape index: {}]
  %s7 = inlined_call_operand.vmem [shape: bf16[4,32,8], index: 7, kind: input, shape index: {}]
  %s8 = inlined_call_operand.vmem [shape: f32[4,1,8], index: 8, kind: input, shape index: {}]
  %s9 = inlined_call_operand.vmem [shape: bf16[4,8,32], index: 9, kind: input, shape index: {}]
  %s10 = inlined_call_operand.vmem [shape: f32[1,32], index: 10, kind: input, shape index: {}]
  %s11 = inlined_call_operand.vmem [shape: f32[1,32], index: 11, kind: input, shape index: {}]
  %s12 = inlined_call_operand.vmem [shape: f32[1,32], index: 12, kind: input, shape index: {}]
  %s13 = inlined_call_operand.vmem [shape: bf16[32,64], index: 13, kind: input, shape index: {}]
  %s14 = inlined_call_operand.vmem [shape: f32[1,64], index: 14, kind: input, shape index: {}]
  %s15 = inlined_call_operand.vmem [shape: bf16[64,32], index: 15, kind: input, shape index: {}]
  %s16 = inlined_call_operand.vmem [shape: f32[1,32], index: 16, kind: input, shape index: {}]
  %s17 = inlined_call_operand.vmem [shape: f32[2,8,32], index: 17, kind: output, shape index: {}]
  %s18 = sld [smem:[#allocation0]]
  $region101: #{attention_block.1} parent=0
    _
  %s20 = ssub.s32 1, %s18
  %s21 = scalar_select 0, %s20, %s18
  loop: start=0, step=1, limit=4
  $region2: #{attention_block.1} parent=0 // loop_pre_header
    _
  $region3: #{attention_block.1} parent=0 // loop_header
    %s23 = sphi 0, %s27
    %p24 = scmp.ge.s32.totalorder %s23, 4
    %s33 = sphi 0, %s35
    %s36 = sphi 0, %s33
    %s37 = sphi 0, %s36
    %s53 = sphi 0, %s37
    %s57 = sphi 0, %s57
    %s59 = sphi 0, %s57
    %s60 = sphi 0, %s59
    %s74 = sphi 0, %s60
    %s78 = sphi 0, %s78
    %s80 = sphi 0, %s78
    %s81 = sphi 0, %s80
    %s95 = sphi 0, %s81
    %s99 = sphi 0, %s99
    %s101 = sphi 0, %s99
    %s102 = sphi 0, %s101
    %s116 = sphi 0, %s102
    %s120 = sphi 0, %s120
    %s122 = sphi 0, %s120
    %s123 = sphi 0, %s122
    %s137 = sphi 0, %s123
    %s141 = sphi 0, %s141
    %s143 = sphi 0, %s141
    %s144 = sphi 0, %s143
    %s158 = sphi 0, %s144
    %s162 = sphi 0, %s162
    %s164 = sphi 0, %s162
    %s165 = sphi 0, %s164
    %s179 = sphi 0, %s165
    %s183 = sphi 0, %s183
    %s185 = sphi 0, %s183
    %s186 = sphi 0, %s185
    %s200 = sphi 0, %s186
    %s204 = sphi 0, %s204
    %s206 = sphi 0, %s204
    %s207 = sphi 0, %s206
    %s221 = sphi 0, %s207
    %s225 = sphi 0, %s225
    %s227 = sphi 0, %s225
    %s228 = sphi 0, %s227
    %s242 = sphi 0, %s228
    %s246 = sphi 0, %s246
    %s248 = sphi 0, %s246
    %s249 = sphi 0, %s248
    %s263 = sphi 0, %s249
    %s267 = sphi 0, %s267
    %s269 = sphi 0, %s267
    %s270 = sphi 0, %s269
    %s284 = sphi 0, %s270
    %s288 = sphi 0, %s288
    %s290 = sphi 0, %s288
    %s291 = sphi 0, %s290
    %s305 = sphi 0, %s291
    %s309 = sphi 0, %s309
    %s311 = sphi 0, %s309
    %s312 = sphi 0, %s311
    %s326 = sphi 0, %s312
    %s330 = sphi 0, %s330
    %s332 = sphi 0, %s330
    %s333 = sphi 0, %s332
    %s347 = sphi 0, %s333
    %s351 = sphi 0, %s351
    %s353 = sphi 0, %s351
    %s354 = sphi 0, %s353
    %s368 = sphi 0, %s354
    %s372 = sphi 0, %s372
    %s374 = sphi 0, %s372
    %s375 = sphi 0, %s374
    %s389 = sphi 0, %s375
    %s395 = sphi 0, %s397
    %s398 = sphi 0, %s395
    %s399 = sphi 0, %s398
    %s415 = sphi 0, %s399
  $region4: #{attention_block.1} parent=0 // loop_header_branch
    %26 = sbr.rel (%p24) target = $region8
  $region5: #{attention_block.1} parent=0 // loop_body
    %s28 = ssub.s32 %s23, 1
    %s29 = ssub.s32 %s23, 2
    %s30 = sadd.s32 %s23, 1
    %s31 = ssub.s32 %s23, %s30
    %p32 = scmp.eq.s32.totalorder %s31, 0
    %s34 = sadd.s32 %s33, 1
    %s35 = scalar_select %p32, %s33, %s34
    %p38 = pneg %p32
    %p39 = scmp.eq.s32.totalorder %s23, 1
    %p40 = por %p38, %p39
    %p41 = scmp.ne.s32.totalorder %s33, %s36
    %p42 = scmp.eq.s32.totalorder %s23, 0
    %p43 = por %p41, %p42
    %p44 = scmp.ne.s32.totalorder %s33, %s36
    %p45 = scmp.eq.s32.totalorder %s28, 1
    %p46 = por %p44, %p45
    %p47 = scmp.ne.s32.totalorder %s36, %s37
    %p48 = scmp.eq.s32.totalorder %s28, 0
    %p49 = por %p47, %p48
    %p50 = scmp.ne.s32.totalorder %s36, %s37
    %p51 = scmp.eq.s32.totalorder %s29, 1
    %p52 = por %p50, %p51
    %p54 = scmp.ne.s32.totalorder %s37, %s53
    %p55 = scmp.eq.s32.totalorder %s29, 0
    %p56 = por %p54, %p55
    %s58 = sadd.s32 %s57, 1
    %p61 = scmp.eq.s32.totalorder %s23, 1
    %p62 = scmp.ne.s32.totalorder %s57, %s59
    %p63 = scmp.eq.s32.totalorder %s23, 0
    %p64 = por %p62, %p63
    %p65 = scmp.ne.s32.totalorder %s57, %s59
    %p66 = scmp.eq.s32.totalorder %s28, 1
    %p67 = por %p65, %p66
    %p68 = scmp.ne.s32.totalorder %s59, %s60
    %p69 = scmp.eq.s32.totalorder %s28, 0
    %p70 = por %p68, %p69
    %p71 = scmp.ne.s32.totalorder %s59, %s60
    %p72 = scmp.eq.s32.totalorder %s29, 1
    %p73 = por %p71, %p72
    %p75 = scmp.ne.s32.totalorder %s60, %s74
    %p76 = scmp.eq.s32.totalorder %s29, 0
    %p77 = por %p75, %p76
    %s79 = sadd.s32 %s78, 1
    %p82 = scmp.eq.s32.totalorder %s23, 1
    %p83 = scmp.ne.s32.totalorder %s78, %s80
    %p84 = scmp.eq.s32.totalorder %s23, 0
    %p85 = por %p83, %p84
    %p86 = scmp.ne.s32.totalorder %s78, %s80
    %p87 = scmp.eq.s32.totalorder %s28, 1
    %p88 = por %p86, %p87
    %p89 = scmp.ne.s32.totalorder %s80, %s81
    %p90 = scmp.eq.s32.totalorder %s28, 0
    %p91 = por %p89, %p90
    %p92 = scmp.ne.s32.totalorder %s80, %s81
    %p93 = scmp.eq.s32.totalorder %s29, 1
    %p94 = por %p92, %p93
    %p96 = scmp.ne.s32.totalorder %s81, %s95
    %p97 = scmp.eq.s32.totalorder %s29, 0
    %p98 = por %p96, %p97
    %s100 = sadd.s32 %s99, 1
    %p103 = scmp.eq.s32.totalorder %s23, 1
    %p104 = scmp.ne.s32.totalorder %s99, %s101
    %p105 = scmp.eq.s32.totalorder %s23, 0
    %p106 = por %p104, %p105
    %p107 = scmp.ne.s32.totalorder %s99, %s101
    %p108 = scmp.eq.s32.totalorder %s28, 1
    %p109 = por %p107, %p108
    %p110 = scmp.ne.s32.totalorder %s101, %s102
    %p111 = scmp.eq.s32.totalorder %s28, 0
    %p112 = por %p110, %p111
    %p113 = scmp.ne.s32.totalorder %s101, %s102
    %p114 = scmp.eq.s32.totalorder %s29, 1
    %p115 = por %p113, %p114
    %p117 = scmp.ne.s32.totalorder %s102, %s116
    %p118 = scmp.eq.s32.totalorder %s29, 0
    %p119 = por %p117, %p118
    %s121 = sadd.s32 %s120, 1
    %p124 = scmp.eq.s32.totalorder %s23, 1
    %p125 = scmp.ne.s32.totalorder %s120, %s122
    %p126 = scmp.eq.s32.totalorder %s23, 0
    %p127 = por %p125, %p126
    %p128 = scmp.ne.s32.totalorder %s120, %s122
    %p129 = scmp.eq.s32.totalorder %s28, 1
    %p130 = por %p128, %p129
    %p131 = scmp.ne.s32.totalorder %s122, %s123
    %p132 = scmp.eq.s32.totalorder %s28, 0
    %p133 = por %p131, %p132
    %p134 = scmp.ne.s32.totalorder %s122, %s123
    %p135 = scmp.eq.s32.totalorder %s29, 1
    %p136 = por %p134, %p135
    %p138 = scmp.ne.s32.totalorder %s123, %s137
    %p139 = scmp.eq.s32.totalorder %s29, 0
    %p140 = por %p138, %p139
    %s142 = sadd.s32 %s141, 1
    %p145 = scmp.eq.s32.totalorder %s23, 1
    %p146 = scmp.ne.s32.totalorder %s141, %s143
    %p147 = scmp.eq.s32.totalorder %s23, 0
    %p148 = por %p146, %p147
    %p149 = scmp.ne.s32.totalorder %s141, %s143
    %p150 = scmp.eq.s32.totalorder %s28, 1
    %p151 = por %p149, %p150
    %p152 = scmp.ne.s32.totalorder %s143, %s144
    %p153 = scmp.eq.s32.totalorder %s28, 0
    %p154 = por %p152, %p153
    %p155 = scmp.ne.s32.totalorder %s143, %s144
    %p156 = scmp.eq.s32.totalorder %s29, 1
    %p157 = por %p155, %p156
    %p159 = scmp.ne.s32.totalorder %s144, %s158
    %p160 = scmp.eq.s32.totalorder %s29, 0
    %p161 = por %p159, %p160
    %s163 = sadd.s32 %s162, 1
    %p166 = scmp.eq.s32.totalorder %s23, 1
    %p167 = scmp.ne.s32.totalorder %s162, %s164
    %p168 = scmp.eq.s32.totalorder %s23, 0
    %p169 = por %p167, %p168
    %p170 = scmp.ne.s32.totalorder %s162, %s164
    %p171 = scmp.eq.s32.totalorder %s28, 1
    %p172 = por %p170, %p171
    %p173 = scmp.ne.s32.totalorder %s164, %s165
    %p174 = scmp.eq.s32.totalorder %s28, 0
    %p175 = por %p173, %p174
    %p176 = scmp.ne.s32.totalorder %s164, %s165
    %p177 = scmp.eq.s32.totalorder %s29, 1
    %p178 = por %p176, %p177
    %p180 = scmp.ne.s32.totalorder %s165, %s179
    %p181 = scmp.eq.s32.totalorder %s29, 0
    %p182 = por %p180, %p181
    %s184 = sadd.s32 %s183, 1
    %p187 = scmp.eq.s32.totalorder %s23, 1
    %p188 = scmp.ne.s32.totalorder %s183, %s185
    %p189 = scmp.eq.s32.totalorder %s23, 0
    %p190 = por %p188, %p189
    %p191 = scmp.ne.s32.totalorder %s183, %s185
    %p192 = scmp.eq.s32.totalorder %s28, 1
    %p193 = por %p191, %p192
    %p194 = scmp.ne.s32.totalorder %s185, %s186
    %p195 = scmp.eq.s32.totalorder %s28, 0
    %p196 = por %p194, %p195
    %p197 = scmp.ne.s32.totalorder %s185, %s186
    %p198 = scmp.eq.s32.totalorder %s29, 1
    %p199 = por %p197, %p198
    %p201 = scmp.ne.s32.totalorder %s186, %s200
    %p202 = scmp.eq.s32.totalorder %s29, 0
    %p203 = por %p201, %p202
    %s205 = sadd.s32 %s204, 1
    %p208 = scmp.eq.s32.totalorder %s23, 1
    %p209 = scmp.ne.s32.totalorder %s204, %s206
    %p210 = scmp.eq.s32.totalorder %s23, 0
    %p211 = por %p209, %p210
    %p212 = scmp.ne.s32.totalorder %s204, %s206
    %p213 = scmp.eq.s32.totalorder %s28, 1
    %p214 = por %p212, %p213
    %p215 = scmp.ne.s32.totalorder %s206, %s207
    %p216 = scmp.eq.s32.totalorder %s28, 0
    %p217 = por %p215, %p216
    %p218 = scmp.ne.s32.totalorder %s206, %s207
    %p219 = scmp.eq.s32.totalorder %s29, 1
    %p220 = por %p218, %p219
    %p222 = scmp.ne.s32.totalorder %s207, %s221
    %p223 = scmp.eq.s32.totalorder %s29, 0
    %p224 = por %p222, %p223
    %s226 = sadd.s32 %s225, 1
    %p229 = scmp.eq.s32.totalorder %s23, 1
    %p230 = scmp.ne.s32.totalorder %s225, %s227
    %p231 = scmp.eq.s32.totalorder %s23, 0
    %p232 = por %p230, %p231
    %p233 = scmp.ne.s32.totalorder %s225, %s227
    %p234 = scmp.eq.s32.totalorder %s28, 1
    %p235 = por %p233, %p234
    %p236 = scmp.ne.s32.totalorder %s227, %s228
    %p237 = scmp.eq.s32.totalorder %s28, 0
    %p238 = por %p236, %p237
    %p239 = scmp.ne.s32.totalorder %s227, %s228
    %p240 = scmp.eq.s32.totalorder %s29, 1
    %p241 = por %p239, %p240
    %p243 = scmp.ne.s32.totalorder %s228, %s242
    %p244 = scmp.eq.s32.totalorder %s29, 0
    %p245 = por %p243, %p244
    %s247 = sadd.s32 %s246, 1
    %p250 = scmp.eq.s32.totalorder %s23, 1
    %p251 = scmp.ne.s32.totalorder %s246, %s248
    %p252 = scmp.eq.s32.totalorder %s23, 0
    %p253 = por %p251, %p252
    %p254 = scmp.ne.s32.totalorder %s246, %s248
    %p255 = scmp.eq.s32.totalorder %s28, 1
    %p256 = por %p254, %p255
    %p257 = scmp.ne.s32.totalorder %s248, %s249
    %p258 = scmp.eq.s32.totalorder %s28, 0
    %p259 = por %p257, %p258
    %p260 = scmp.ne.s32.totalorder %s248, %s249
    %p261 = scmp.eq.s32.totalorder %s29, 1
    %p262 = por %p260, %p261
    %p264 = scmp.ne.s32.totalorder %s249, %s263
    %p265 = scmp.eq.s32.totalorder %s29, 0
    %p266 = por %p264, %p265
    %s268 = sadd.s32 %s267, 1
    %p271 = scmp.eq.s32.totalorder %s23, 1
    %p272 = scmp.ne.s32.totalorder %s267, %s269
    %p273 = scmp.eq.s32.totalorder %s23, 0
    %p274 = por %p272, %p273
    %p275 = scmp.ne.s32.totalorder %s267, %s269
    %p276 = scmp.eq.s32.totalorder %s28, 1
    %p277 = por %p275, %p276
    %p278 = scmp.ne.s32.totalorder %s269, %s270
    %p279 = scmp.eq.s32.totalorder %s28, 0
    %p280 = por %p278, %p279
    %p281 = scmp.ne.s32.totalorder %s269, %s270
    %p282 = scmp.eq.s32.totalorder %s29, 1
    %p283 = por %p281, %p282
    %p285 = scmp.ne.s32.totalorder %s270, %s284
    %p286 = scmp.eq.s32.totalorder %s29, 0
    %p287 = por %p285, %p286
    %s289 = sadd.s32 %s288, 1
    %p292 = scmp.eq.s32.totalorder %s23, 1
    %p293 = scmp.ne.s32.totalorder %s288, %s290
    %p294 = scmp.eq.s32.totalorder %s23, 0
    %p295 = por %p293, %p294
    %p296 = scmp.ne.s32.totalorder %s288, %s290
    %p297 = scmp.eq.s32.totalorder %s28, 1
    %p298 = por %p296, %p297
    %p299 = scmp.ne.s32.totalorder %s290, %s291
    %p300 = scmp.eq.s32.totalorder %s28, 0
    %p301 = por %p299, %p300
    %p302 = scmp.ne.s32.totalorder %s290, %s291
    %p303 = scmp.eq.s32.totalorder %s29, 1
    %p304 = por %p302, %p303
    %p306 = scmp.ne.s32.totalorder %s291, %s305
    %p307 = scmp.eq.s32.totalorder %s29, 0
    %p308 = por %p306, %p307
    %s310 = sadd.s32 %s309, 1
    %p313 = scmp.eq.s32.totalorder %s23, 1
    %p314 = scmp.ne.s32.totalorder %s309, %s311
    %p315 = scmp.eq.s32.totalorder %s23, 0
    %p316 = por %p314, %p315
    %p317 = scmp.ne.s32.totalorder %s309, %s311
    %p318 = scmp.eq.s32.totalorder %s28, 1
    %p319 = por %p317, %p318
    %p320 = scmp.ne.s32.totalorder %s311, %s312
    %p321 = scmp.eq.s32.totalorder %s28, 0
    %p322 = por %p320, %p321
    %p323 = scmp.ne.s32.totalorder %s311, %s312
    %p324 = scmp.eq.s32.totalorder %s29, 1
    %p325 = por %p323, %p324
    %p327 = scmp.ne.s32.totalorder %s312, %s326
    %p328 = scmp.eq.s32.totalorder %s29, 0
    %p329 = por %p327, %p328
    %s331 = sadd.s32 %s330, 1
    %p334 = scmp.eq.s32.totalorder %s23, 1
    %p335 = scmp.ne.s32.totalorder %s330, %s332
    %p336 = scmp.eq.s32.totalorder %s23, 0
    %p337 = por %p335, %p336
    %p338 = scmp.ne.s32.totalorder %s330, %s332
    %p339 = scmp.eq.s32.totalorder %s28, 1
    %p340 = por %p338, %p339
    %p341 = scmp.ne.s32.totalorder %s332, %s333
    %p342 = scmp.eq.s32.totalorder %s28, 0
    %p343 = por %p341, %p342
    %p344 = scmp.ne.s32.totalorder %s332, %s333
    %p345 = scmp.eq.s32.totalorder %s29, 1
    %p346 = por %p344, %p345
    %p348 = scmp.ne.s32.totalorder %s333, %s347
    %p349 = scmp.eq.s32.totalorder %s29, 0
    %p350 = por %p348, %p349
    %s352 = sadd.s32 %s351, 1
    %p355 = scmp.eq.s32.totalorder %s23, 1
    %p356 = scmp.ne.s32.totalorder %s351, %s353
    %p357 = scmp.eq.s32.totalorder %s23, 0
    %p358 = por %p356, %p357
    %p359 = scmp.ne.s32.totalorder %s351, %s353
    %p360 = scmp.eq.s32.totalorder %s28, 1
    %p361 = por %p359, %p360
    %p362 = scmp.ne.s32.totalorder %s353, %s354
    %p363 = scmp.eq.s32.totalorder %s28, 0
    %p364 = por %p362, %p363
    %p365 = scmp.ne.s32.totalorder %s353, %s354
    %p366 = scmp.eq.s32.totalorder %s29, 1
    %p367 = por %p365, %p366
    %p369 = scmp.ne.s32.totalorder %s354, %s368
    %p370 = scmp.eq.s32.totalorder %s29, 0
    %p371 = por %p369, %p370
    %s373 = sadd.s32 %s372, 1
    %p376 = scmp.eq.s32.totalorder %s23, 1
    %p377 = scmp.ne.s32.totalorder %s372, %s374
    %p378 = scmp.eq.s32.totalorder %s23, 0
    %p379 = por %p377, %p378
    %p380 = scmp.ne.s32.totalorder %s372, %s374
    %p381 = scmp.eq.s32.totalorder %s28, 1
    %p382 = por %p380, %p381
    %p383 = scmp.ne.s32.totalorder %s374, %s375
    %p384 = scmp.eq.s32.totalorder %s28, 0
    %p385 = por %p383, %p384
    %p386 = scmp.ne.s32.totalorder %s374, %s375
    %p387 = scmp.eq.s32.totalorder %s29, 1
    %p388 = por %p386, %p387
    %p390 = scmp.ne.s32.totalorder %s375, %s389
    %p391 = scmp.eq.s32.totalorder %s29, 0
    %p392 = por %p390, %p391
    %s393 = ssub.s32 %s23, %s30
    %p394 = scmp.eq.s32.totalorder %s393, 0
    %s396 = sadd.s32 %s395, 1
    %s397 = scalar_select %p394, %s395, %s396
    %p400 = pneg %p394
    %p401 = scmp.eq.s32.totalorder %s23, 1
    %p402 = por %p400, %p401
    %p403 = scmp.ne.s32.totalorder %s395, %s398
    %p404 = scmp.eq.s32.totalorder %s23, 0
    %p405 = por %p403, %p404
    %p406 = scmp.ne.s32.totalorder %s395, %s398
    %p407 = scmp.eq.s32.totalorder %s28, 1
    %p408 = por %p406, %p407
    %p409 = scmp.ne.s32.totalorder %s398, %s399
    %p410 = scmp.eq.s32.totalorder %s28, 0
    %p411 = por %p409, %p410
    %p412 = scmp.ne.s32.totalorder %s398, %s399
    %p413 = scmp.eq.s32.totalorder %s29, 1
    %p414 = por %p412, %p413
    %p416 = scmp.ne.s32.totalorder %s399, %s415
    %p417 = scmp.eq.s32.totalorder %s29, 0
    %p418 = por %p416, %p417
    %p419 = scmp.le.s32.totalorder 1, %s23
    %p420 = scmp.lt.s32.totalorder %s23, 3
    %p421 = pnand %p419, %p420
    %p422 = pneg %p421
    // Predicated region
    $region9: #{attention_block.1} parent=5 // pred_check
      _
    $region10: #{attention_block.1} parent=5 // pred_check_branch
      %424 = sbr.rel (%p421) target = $region12
    $region11: #{attention_block.1} parent=5 // pred_region
      %s425 = ssub.s32 %s23, 1
      // Predicated region
      $region13: #{attention_block.1} parent=11 // pred_check
        %p426 = pneg %p70
      $region14: #{attention_block.1} parent=11 // pred_check_branch
        %428 = sbr.rel (%p426) target = $region16
      $region15: #{attention_block.1} parent=11 // pred_region
        _
      $region16: #{attention_block.1} parent=11 // pred_fallthru
        _
      // Predicated region
      $region17: #{attention_block.1} parent=11 // pred_check
        %p429 = pneg %p91
      $region18: #{attention_block.1} parent=11 // pred_check_branch
        %431 = sbr.rel (%p429) target = $region20
      $region19: #{attention_block.1} parent=11 // pred_region
        _
      $region20: #{attention_block.1} parent=11 // pred_fallthru
        _
      // Predicated region
      $region21: #{attention_block.1} parent=11 // pred_check
        %p432 = pneg %p112
      $region22: #{attention_block.1} parent=11 // pred_check_branch
        %434 = sbr.rel (%p432) target = $region24
      $region23: #{attention_block.1} parent=11 // pred_region
        _
      $region24: #{attention_block.1} parent=11 // pred_fallthru
        _
      // Predicated region
      $region25: #{attention_block.1} parent=11 // pred_check
        %p435 = pneg %p133
      $region26: #{attention_block.1} parent=11 // pred_check_branch
        %437 = sbr.rel (%p435) target = $region28
      $region27: #{attention_block.1} parent=11 // pred_region
        _
      $region28: #{attention_block.1} parent=11 // pred_fallthru
        _
      // Predicated region
      $region29: #{attention_block.1} parent=11 // pred_check
        %p438 = pneg %p154
      $region30: #{attention_block.1} parent=11 // pred_check_branch
        %440 = sbr.rel (%p438) target = $region32
      $region31: #{attention_block.1} parent=11 // pred_region
        _
      $region32: #{attention_block.1} parent=11 // pred_fallthru
        _
      // Predicated region
      $region33: #{attention_block.1} parent=11 // pred_check
        %p441 = pneg %p175
      $region34: #{attention_block.1} parent=11 // pred_check_branch
        %443 = sbr.rel (%p441) target = $region36
      $region35: #{attention_block.1} parent=11 // pred_region
        _
      $region36: #{attention_block.1} parent=11 // pred_fallthru
        _
      // Predicated region
      $region37: #{attention_block.1} parent=11 // pred_check
        %p444 = pneg %p196
      $region38: #{attention_block.1} parent=11 // pred_check_branch
        %446 = sbr.rel (%p444) target = $region40
      $region39: #{attention_block.1} parent=11 // pred_region
        _
      $region40: #{attention_block.1} parent=11 // pred_fallthru
        _
      // Predicated region
      $region41: #{attention_block.1} parent=11 // pred_check
        %p447 = pneg %p217
      $region42: #{attention_block.1} parent=11 // pred_check_branch
        %449 = sbr.rel (%p447) target = $region44
      $region43: #{attention_block.1} parent=11 // pred_region
        _
      $region44: #{attention_block.1} parent=11 // pred_fallthru
        _
      // Predicated region
      $region45: #{attention_block.1} parent=11 // pred_check
        %p450 = pneg %p238
      $region46: #{attention_block.1} parent=11 // pred_check_branch
        %452 = sbr.rel (%p450) target = $region48
      $region47: #{attention_block.1} parent=11 // pred_region
        _
      $region48: #{attention_block.1} parent=11 // pred_fallthru
        _
      // Predicated region
      $region49: #{attention_block.1} parent=11 // pred_check
        %p453 = pneg %p259
      $region50: #{attention_block.1} parent=11 // pred_check_branch
        %455 = sbr.rel (%p453) target = $region52
      $region51: #{attention_block.1} parent=11 // pred_region
        _
      $region52: #{attention_block.1} parent=11 // pred_fallthru
        _
      // Predicated region
      $region53: #{attention_block.1} parent=11 // pred_check
        %p456 = pneg %p280
      $region54: #{attention_block.1} parent=11 // pred_check_branch
        %458 = sbr.rel (%p456) target = $region56
      $region55: #{attention_block.1} parent=11 // pred_region
        _
      $region56: #{attention_block.1} parent=11 // pred_fallthru
        _
      // Predicated region
      $region57: #{attention_block.1} parent=11 // pred_check
        %p459 = pneg %p301
      $region58: #{attention_block.1} parent=11 // pred_check_branch
        %461 = sbr.rel (%p459) target = $region60
      $region59: #{attention_block.1} parent=11 // pred_region
        _
      $region60: #{attention_block.1} parent=11 // pred_fallthru
        _
      // Predicated region
      $region61: #{attention_block.1} parent=11 // pred_check
        %p462 = pneg %p322
      $region62: #{attention_block.1} parent=11 // pred_check_branch
        %464 = sbr.rel (%p462) target = $region64
      $region63: #{attention_block.1} parent=11 // pred_region
        _
      $region64: #{attention_block.1} parent=11 // pred_fallthru
        _
      // Predicated region
      $region65: #{attention_block.1} parent=11 // pred_check
        %p465 = pneg %p343
      $region66: #{attention_block.1} parent=11 // pred_check_branch
        %467 = sbr.rel (%p465) target = $region68
      $region67: #{attention_block.1} parent=11 // pred_region
        _
      $region68: #{attention_block.1} parent=11 // pred_fallthru
        _
      // Predicated region
      $region69: #{attention_block.1} parent=11 // pred_check
        %p468 = pneg %p364
      $region70: #{attention_block.1} parent=11 // pred_check_branch
        %470 = sbr.rel (%p468) target = $region72
      $region71: #{attention_block.1} parent=11 // pred_region
        _
      $region72: #{attention_block.1} parent=11 // pred_fallthru
        _
      // Predicated region
      $region73: #{attention_block.1} parent=11 // pred_check
        %p471 = pneg %p385
      $region74: #{attention_block.1} parent=11 // pred_check_branch
        %473 = sbr.rel (%p471) target = $region76
      $region75: #{attention_block.1} parent=11 // pred_region
        _
      $region76: #{attention_block.1} parent=11 // pred_fallthru
        _
    $region12: #{attention_block.1} parent=5 // pred_fallthru
      _
    %p474 = scmp.lt.s32.totalorder %s23, 2
    // Predicated region
    $region77: #{attention_block.1} parent=5 // pred_check
      %p475 = pneg %p474
    $region78: #{attention_block.1} parent=5 // pred_check_branch
      %477 = sbr.rel (%p475) target = $region80
    $region79: #{attention_block.1} parent=5 // pred_region
      // Predicated region
      $region81: #{attention_block.1} parent=79 // pred_check
        %p478 = pneg %p43
      $region82: #{attention_block.1} parent=79 // pred_check_branch
        %480 = sbr.rel (%p478) target = $region84
      $region83: #{attention_block.1} parent=79 // pred_region
        %p481 = scmp.lt.s32.totalorder %s23, 1
        %s482 = scalar_select %p481, %s23, 1
        %s483 = smul.addr %s482, 8
        %s484 = scalar_lea.vmem %s0, %s483
      $region84: #{attention_block.1} parent=79 // pred_fallthru
        _
    $region80: #{attention_block.1} parent=5 // pred_fallthru
      _
    %p485 = scmp.le.s32.totalorder 1, %s23
    %p486 = scmp.lt.s32.totalorder %s23, 3
    %p487 = pnand %p485, %p486
    %p488 = pneg %p487
    // Predicated region
    $region85: #{attention_block.1} parent=5 // pred_check
      _
    $region86: #{attention_block.1} parent=5 // pred_check_branch
      %490 = sbr.rel (%p487) target = $region88
    $region87: #{attention_block.1} parent=5 // pred_region
      %s491 = ssub.s32 %s23, 1
      %p492 = scmp.lt.s32.totalorder %s28, 1
      %s493 = scalar_select %p492, %s28, 1
      %s494 = smul.addr %s493, 8
      %s495 = scalar_lea.vmem %s0, %s494
      %p496 = pneg %p49
      %p497 = pneg %p46
      %p498 = pneg %p70
      %p499 = pneg %p67
      %p500 = pneg %p91
      %p501 = pneg %p88
      %p502 = pneg %p112
      %p503 = pneg %p109
      %p504 = pneg %p133
      %p505 = pneg %p130
      %p506 = pneg %p154
      %p507 = pneg %p151
      %p508 = pneg %p175
      %p509 = pneg %p172
      %p510 = pneg %p196
      %p511 = pneg %p193
      %p512 = pneg %p217
      %p513 = pneg %p214
      %p514 = pneg %p238
      %p515 = pneg %p235
      %p516 = pneg %p259
      %p517 = pneg %p256
      %p518 = pneg %p280
      %p519 = pneg %p277
      %p520 = pneg %p301
      %p521 = pneg %p298
      %p522 = pneg %p322
      %p523 = pneg %p319
      %p524 = pneg %p343
      %p525 = pneg %p340
      %p526 = pneg %p364
      %p527 = pneg %p361
      %p528 = pneg %p385
      %p529 = pneg %p382
      %p530 = pneg %p411
      %p531 = pneg %p408
      %p532 = scmp.lt.s32.totalorder %s28, 1
      %s533 = scalar_select %p532, %s28, 1
      %s534 = smul.addr %s533, 8
      %s535 = scalar_lea.vmem %s17, %s534
      %p536 = scmp.lt.s32.totalorder %s28, 1
      %s537 = scalar_select %p536, %s28, 1
      %s538 = smul.addr %s537, 8
      %s539 = scalar_lea.vmem %s0, %s538
      %p540 = scmp.lt.s32.totalorder %s28, 1
      %s541 = scalar_select %p540, %s28, 1
      %s542 = smul.addr %s541, 8
      %s543 = scalar_lea.vmem %s17, %s542
      %v545 = vld [vmem:[%s539] sm:$0xff]
      %vm546 = vcmask 261120
      %v547 = vsel %vm546, %v545, 0.0
      %548 = vadd.xlane.f32.xlu0 %v547
      %v549 = vpop.xlane.xlu0 %548
      %v550 = vrcp.pop 32.0
      %v551 = vmul.f32 %v549, %v550
      %v552 = vsub.f32 %v545, %v551
      %v553 = vmul.f32 %v552, %v552
      %v554 = vsel %vm546, %v553, 0.0
      %555 = vadd.xlane.f32.xlu0 %v554
      %v556 = vpop.xlane.xlu0 %555
      %v557 = vmul.f32 %v556, %v550
      %v558 = vadd.f32 %v557, 1e-05
      %v559 = vrsqrt.pop %v558
      %v560 = vmul.f32 %v552, %v559
      %v561 = vld [vmem:[%s1] sm:$0x1]
      %v563 = vlaneseq
      %v564 = vshrl.u32 %v563, 7
      %v565 = vsub.s32 0, %v564
      %v566 = vrot.slane %v561, %v565
      %v568 = vmul.f32 %v560, %v566
      %v569 = vld [vmem:[%s2] sm:$0x1]
      %v571 = vlaneseq
      %v572 = vshrl.u32 %v571, 7
      %v573 = vsub.s32 0, %v572
      %v574 = vrot.slane %v569, %v573
      %v576 = vadd.f32 %v568, %v574
      %v577 = vpack.c.bf16 %v576, %v576
      %v578 = vld [vmem:[%s3] sm:$0xf]
      %v579 = vld [vmem:[%s3 + $0x4] sm:$0xf]
      %v580 = vld [vmem:[%s3 + $0x8] sm:$0xf]
      %v581 = vld [vmem:[%s3 + $0xc] sm:$0xf]
      %v582 = vld [vmem:[%s4] sm:$0x1]
      %v584 = vlaneseq
      %v585 = vshrl.u32 %v584, 7
      %v586 = vsub.s32 0, %v585
      %v587 = vrot.slane %v582, %v586
      %v593 = vunpack.c.l.b16 %v578
      %v594 = vunpack.c.l.b16 %v579
      %v595 = vunpack.c.l.b16 %v580
      %v596 = vunpack.c.l.b16 %v581
      %v597 = vpack.c.b16 %v594, %v593
      %v598 = vpack.c.b16 %v596, %v595
      %v602 = vsel %vm546, %v577, 0
      %604 = vmatprep.subr.bf16.mxu0 0
      %605 = vmatpush1.bf16.msra.mxu0 0
      %606 = vmatprep.subr.bf16.mxu0 0
      %607 = vmatpush1.bf16.msra.mxu0 0
      %608 = vmatprep.subr.bf16.mxu0 0
      %609 = vmatpush1.bf16.msra.mxu0 0
      %610 = vmatprep.subr.bf16.mxu0 0
      %611 = vmatpush1.bf16.msra.mxu0 0
      %612 = vmatprep.subr.bf16.mxu0 0
      %613 = vmatpush1.bf16.msra.mxu0 0
      %614 = vmatprep.subr.bf16.mxu0 0
      %615 = vmatpush1.bf16.msra.mxu0 0
      %616 = vmatprep.subr.bf16.mxu0 0
      %617 = vmatpush1.bf16.msra.mxu0 %v598
      %618 = vmatprep.subr.bf16.mxu0 0
      %619 = vmatpush1.bf16.msra.mxu0 %v597
      %620 = vmatprep.subr.bf16.mxu0 0
      %621 = vmatpush2.bf16.msra.mxu0 0
      %622 = vmatprep.subr.bf16.mxu0 0
      %623 = vmatpush2.bf16.msra.mxu0 0
      %624 = vmatprep.subr.bf16.mxu0 0
      %625 = vmatpush2.bf16.msra.mxu0 0
      %626 = vmatprep.subr.bf16.mxu0 0
      %627 = vmatpush2.bf16.msra.mxu0 0
      %628 = vmatprep.subr.bf16.mxu0 0
      %629 = vmatpush2.bf16.msra.mxu0 0
      %630 = vmatprep.subr.bf16.mxu0 0
      %631 = vmatpush2.bf16.msra.mxu0 0
      %632 = vmatprep.subr.bf16.mxu0 0
      %633 = vmatpush2.bf16.msra.mxu0 0
      %634 = vmatprep.subr.bf16.mxu0 0
      %635 = vmatpush2.bf16.msra.mxu0 0
      %636 = vmatprep.mubr.bf16.mxu0 0
      %637 = vmatmul.mubr.bf16.gmra.mxu0 %v602
      %v638 = vpop.f32.mrf.mxu0
      %v639 = vadd.f32 %v587, %v638
      %v640 = vpop.f32.mrf.mxu0
      %v641 = vpop.f32.mrf.mxu0
      %v642 = vpop.f32.mrf.mxu0
      %643 = vdwg.mxu0
      %v644 = vld [vmem:[%s5] sm:$0xf]
      %v645 = vld [vmem:[%s5 + $0x4] sm:$0xf]
      %v646 = vld [vmem:[%s5 + $0x8] sm:$0xf]
      %v647 = vld [vmem:[%s5 + $0xc] sm:$0xf]
      %v648 = vld [vmem:[%s6] sm:$0x1]
      %v650 = vlaneseq
      %v651 = vshrl.u32 %v650, 7
      %v652 = vsub.s32 0, %v651
      %v653 = vrot.slane %v648, %v652
      %v659 = vunpack.c.l.b16 %v644
      %v660 = vunpack.c.l.b16 %v645
      %v661 = vunpack.c.l.b16 %v646
      %v662 = vunpack.c.l.b16 %v647
      %v663 = vpack.c.b16 %v660, %v659
      %v664 = vpack.c.b16 %v662, %v661
      %667 = vmatprep.subr.bf16.mxu0 0
      %668 = vmatpush1.bf16.msra.mxu0 0
      %669 = vmatprep.subr.bf16.mxu0 0
      %670 = vmatpush1.bf16.msra.mxu0 0
      %671 = vmatprep.subr.bf16.mxu0 0
      %672 = vmatpush1.bf16.msra.mxu0 0
      %673 = vmatprep.subr.bf16.mxu0 0
      %674 = vmatpush1.bf16.msra.mxu0 0
      %675 = vmatprep.subr.bf16.mxu0 0
      %676 = vmatpush1.bf16.msra.mxu0 0
      %677 = vmatprep.subr.bf16.mxu0 0
      %678 = vmatpush1.bf16.msra.mxu0 0
      %679 = vmatprep.subr.bf16.mxu0 0
      %680 = vmatpush1.bf16.msra.mxu0 %v664
      %681 = vmatprep.subr.bf16.mxu0 0
      %682 = vmatpush1.bf16.msra.mxu0 %v663
      %683 = vmatprep.subr.bf16.mxu0 0
      %684 = vmatpush2.bf16.msra.mxu0 0
      %685 = vmatprep.subr.bf16.mxu0 0
      %686 = vmatpush2.bf16.msra.mxu0 0
      %687 = vmatprep.subr.bf16.mxu0 0
      %688 = vmatpush2.bf16.msra.mxu0 0
      %689 = vmatprep.subr.bf16.mxu0 0
      %690 = vmatpush2.bf16.msra.mxu0 0
      %691 = vmatprep.subr.bf16.mxu0 0
      %692 = vmatpush2.bf16.msra.mxu0 0
      %693 = vmatprep.subr.bf16.mxu0 0
      %694 = vmatpush2.bf16.msra.mxu0 0
      %695 = vmatprep.subr.bf16.mxu0 0
      %696 = vmatpush2.bf16.msra.mxu0 0
      %697 = vmatprep.subr.bf16.mxu0 0
      %698 = vmatpush2.bf16.msra.mxu0 0
      %699 = vmatprep.mubr.bf16.mxu0 0
      %700 = vmatmul.mubr.bf16.gmra.mxu0 %v602
      %v701 = vpop.f32.mrf.mxu0
      %v702 = vadd.f32 %v653, %v701
      %v703 = vpop.f32.mrf.mxu0
      %v704 = vpop.f32.mrf.mxu0
      %v705 = vpop.f32.mrf.mxu0
      %706 = vdwg.mxu0
      %v707 = vld [vmem:[%s7] sm:$0xf]
      %v708 = vld [vmem:[%s7 + $0x4] sm:$0xf]
      %v709 = vld [vmem:[%s7 + $0x8] sm:$0xf]
      %v710 = vld [vmem:[%s7 + $0xc] sm:$0xf]
      %v711 = vld [vmem:[%s8] sm:$0x1]
      %v713 = vlaneseq
      %v714 = vshrl.u32 %v713, 7
      %v715 = vsub.s32 0, %v714
      %v716 = vrot.slane %v711, %v715
      %v722 = vunpack.c.l.b16 %v707
      %v723 = vunpack.c.l.b16 %v708
      %v724 = vunpack.c.l.b16 %v709
      %v725 = vunpack.c.l.b16 %v710
      %v726 = vpack.c.b16 %v723, %v722
      %v727 = vpack.c.b16 %v725, %v724
      %730 = vmatprep.subr.bf16.mxu0 0
      %731 = vmatpush1.bf16.msra.mxu0 0
      %732 = vmatprep.subr.bf16.mxu0 0
      %733 = vmatpush1.bf16.msra.mxu0 0
      %734 = vmatprep.subr.bf16.mxu0 0
      %735 = vmatpush1.bf16.msra.mxu0 0
      %736 = vmatprep.subr.bf16.mxu0 0
      %737 = vmatpush1.bf16.msra.mxu0 0
      %738 = vmatprep.subr.bf16.mxu0 0
      %739 = vmatpush1.bf16.msra.mxu0 0
      %740 = vmatprep.subr.bf16.mxu0 0
      %741 = vmatpush1.bf16.msra.mxu0 0
      %742 = vmatprep.subr.bf16.mxu0 0
      %743 = vmatpush1.bf16.msra.mxu0 %v727
      %744 = vmatprep.subr.bf16.mxu0 0
      %745 = vmatpush1.bf16.msra.mxu0 %v726
      %746 = vmatprep.subr.bf16.mxu0 0
      %747 = vmatpush2.bf16.msra.mxu0 0
      %748 = vmatprep.subr.bf16.mxu0 0
      %749 = vmatpush2.bf16.msra.mxu0 0
      %750 = vmatprep.subr.bf16.mxu0 0
      %751 = vmatpush2.bf16.msra.mxu0 0
      %752 = vmatprep.subr.bf16.mxu0 0
      %753 = vmatpush2.bf16.msra.mxu0 0
      %754 = vmatprep.subr.bf16.mxu0 0
      %755 = vmatpush2.bf16.msra.mxu0 0
      %756 = vmatprep.subr.bf16.mxu0 0
      %757 = vmatpush2.bf16.msra.mxu0 0
      %758 = vmatprep.subr.bf16.mxu0 0
      %759 = vmatpush2.bf16.msra.mxu0 0
      %760 = vmatprep.subr.bf16.mxu0 0
      %761 = vmatpush2.bf16.msra.mxu0 0
      %762 = vmatprep.mubr.bf16.mxu0 0
      %763 = vmatmul.mubr.bf16.gmra.mxu0 %v602
      %v764 = vpop.f32.mrf.mxu0
      %v765 = vadd.f32 %v716, %v764
      %v766 = vpop.f32.mrf.mxu0
      %v767 = vpop.f32.mrf.mxu0
      %v768 = vpop.f32.mrf.mxu0
      %769 = vdwg.mxu0
      %v770 = vpack.c.bf16 %v639, %v639
      %v771 = vpack.c.bf16 %v702, %v702
      %vm772 = vcmask 64512
      %v774 = vsel %vm772, %v770, 0
      %v777 = vsel %vm772, %v771, 0
      %779 = vmatprep.subr.bf16.mxu0 0
      %780 = vmatpush1.bf16.xpose.msra.mxu0 0
      %781 = vmatprep.subr.bf16.mxu0 0
      %782 = vmatpush1.bf16.xpose.msra.mxu0 0
      %783 = vmatprep.subr.bf16.mxu0 0
      %784 = vmatpush1.bf16.xpose.msra.mxu0 0
      %785 = vmatprep.subr.bf16.mxu0 0
      %786 = vmatpush1.bf16.xpose.msra.mxu0 0
      %787 = vmatprep.subr.bf16.mxu0 0
      %788 = vmatpush1.bf16.xpose.msra.mxu0 0
      %789 = vmatprep.subr.bf16.mxu0 0
      %790 = vmatpush1.bf16.xpose.msra.mxu0 0
      %791 = vmatprep.subr.bf16.mxu0 0
      %792 = vmatpush1.bf16.xpose.msra.mxu0 0
      %793 = vmatprep.subr.bf16.mxu0 0
      %794 = vmatpush1.bf16.xpose.msra.mxu0 %v777
      %795 = vmatprep.subr.bf16.mxu0 0
      %796 = vmatpush2.bf16.xpose.msra.mxu0 0
      %797 = vmatprep.subr.bf16.mxu0 0
      %798 = vmatpush2.bf16.xpose.msra.mxu0 0
      %799 = vmatprep.subr.bf16.mxu0 0
      %800 = vmatpush2.bf16.xpose.msra.mxu0 0
      %801 = vmatprep.subr.bf16.mxu0 0
      %802 = vmatpush2.bf16.xpose.msra.mxu0 0
      %803 = vmatprep.subr.bf16.mxu0 0
      %804 = vmatpush2.bf16.xpose.msra.mxu0 0
      %805 = vmatprep.subr.bf16.mxu0 0
      %806 = vmatpush2.bf16.xpose.msra.mxu0 0
      %807 = vmatprep.subr.bf16.mxu0 0
      %808 = vmatpush2.bf16.xpose.msra.mxu0 0
      %809 = vmatprep.subr.bf16.mxu0 0
      %810 = vmatpush2.bf16.xpose.msra.mxu0 0
      %811 = vmatprep.mubr.bf16.mxu0 0
      %812 = vmatmul.mubr.bf16.gmra.mxu0 %v774
      %v813 = vpop.f32.mrf.mxu0
      %v814 = vadd.f32 0.0, %v813
      %v815 = vpop.f32.mrf.mxu0
      %v816 = vpop.f32.mrf.mxu0
      %v817 = vpop.f32.mrf.mxu0
      %818 = vdwg.mxu0
      %v819 = vsel %vm772, %v814, -inf
      %820 = vmax.xlane.f32.xlu0 %v819
      %v821 = vpop.xlane.xlu0 %820
      %v822 = vsub.f32 %v814, %v821
      %v823 = vmul.f32 %v822, 1.442695
      %v824 = vpow.pop %v823
      %v825 = vsel %vm772, %v824, 0.0
      %826 = vadd.xlane.f32.xlu0 %v825
      %v827 = vpop.xlane.xlu0 %826
      %v828 = vrcp.pop %v827
      %v829 = vmul.f32 %v824, %v828
      %v830 = vpack.c.bf16 %v829, %v829
      %v831 = vpack.c.bf16 %v765, %v765
      %v833 = vsel %vm772, %v830, 0
      %vm835 = vcmask 1043456
      %v837 = vsel %vm835, %v831, 0
      %839 = vmatprep.subr.bf16.mxu0 0
      %840 = vmatpush1.bf16.msra.mxu0 0
      %841 = vmatprep.subr.bf16.mxu0 0
      %842 = vmatpush1.bf16.msra.mxu0 0
      %843 = vmatprep.subr.bf16.mxu0 0
      %844 = vmatpush1.bf16.msra.mxu0 0
      %845 = vmatprep.subr.bf16.mxu0 0
      %846 = vmatpush1.bf16.msra.mxu0 0
      %847 = vmatprep.subr.bf16.mxu0 0
      %848 = vmatpush1.bf16.msra.mxu0 0
      %849 = vmatprep.subr.bf16.mxu0 0
      %850 = vmatpush1.bf16.msra.mxu0 0
      %851 = vmatprep.subr.bf16.mxu0 0
      %852 = vmatpush1.bf16.msra.mxu0 0
      %853 = vmatprep.subr.bf16.mxu0 0
      %854 = vmatpush1.bf16.msra.mxu0 %v837
      %855 = vmatprep.subr.bf16.mxu0 0
      %856 = vmatpush2.bf16.msra.mxu0 0
      %857 = vmatprep.subr.bf16.mxu0 0
      %858 = vmatpush2.bf16.msra.mxu0 0
      %859 = vmatprep.subr.bf16.mxu0 0
      %860 = vmatpush2.bf16.msra.mxu0 0
      %861 = vmatprep.subr.bf16.mxu0 0
      %862 = vmatpush2.bf16.msra.mxu0 0
      %863 = vmatprep.subr.bf16.mxu0 0
      %864 = vmatpush2.bf16.msra.mxu0 0
      %865 = vmatprep.subr.bf16.mxu0 0
      %866 = vmatpush2.bf16.msra.mxu0 0
      %867 = vmatprep.subr.bf16.mxu0 0
      %868 = vmatpush2.bf16.msra.mxu0 0
      %869 = vmatprep.subr.bf16.mxu0 0
      %870 = vmatpush2.bf16.msra.mxu0 0
      %871 = vmatprep.mubr.bf16.mxu0 0
      %872 = vmatmul.mubr.bf16.gmra.mxu0 %v833
      %v873 = vpop.f32.mrf.mxu0
      %v874 = vadd.f32 0.0, %v873
      %v875 = vpop.f32.mrf.mxu0
      %v876 = vpop.f32.mrf.mxu0
      %v877 = vpop.f32.mrf.mxu0
      %878 = vdwg.mxu0
      %v879 = vpack.c.bf16 %v874, %v874
      %v880 = vld [vmem:[%s9] sm:$0xf]
      %s881 = scalar_lea.vmem %s3, 16
      %v882 = vld [vmem:[%s881] sm:$0xf]
      %v883 = vld [vmem:[%s881 + $0x4] sm:$0xf]
      %v884 = vld [vmem:[%s881 + $0x8] sm:$0xf]
      %v885 = vld [vmem:[%s881 + $0xc] sm:$0xf]
      %s886 = scalar_lea.vmem %s4, 1
      %v887 = vld [vmem:[%s886] sm:$0x1]
      %v889 = vlaneseq
      %v890 = vshrl.u32 %v889, 7
      %v891 = vsub.s32 0, %v890
      %v892 = vrot.slane %v887, %v891
      %v898 = vunpack.c.l.b16 %v882
      %v899 = vunpack.c.l.b16 %v883
      %v900 = vunpack.c.l.b16 %v884
      %v901 = vunpack.c.l.b16 %v885
      %v902 = vpack.c.b16 %v899, %v898
      %v903 = vpack.c.b16 %v901, %v900
      %906 = vmatprep.subr.bf16.mxu0 0
      %907 = vmatpush1.bf16.msra.mxu0 0
      %908 = vmatprep.subr.bf16.mxu0 0
      %909 = vmatpush1.bf16.msra.mxu0 0
      %910 = vmatprep.subr.bf16.mxu0 0
      %911 = vmatpush1.bf16.msra.mxu0 0
      %912 = vmatprep.subr.bf16.mxu0 0
      %913 = vmatpush1.bf16.msra.mxu0 0
      %914 = vmatprep.subr.bf16.mxu0 0
      %915 = vmatpush1.bf16.msra.mxu0 0
      %916 = vmatprep.subr.bf16.mxu0 0
      %917 = vmatpush1.bf16.msra.mxu0 0
      %918 = vmatprep.subr.bf16.mxu0 0
      %919 = vmatpush1.bf16.msra.mxu0 %v903
      %920 = vmatprep.subr.bf16.mxu0 0
      %921 = vmatpush1.bf16.msra.mxu0 %v902
      %922 = vmatprep.subr.bf16.mxu0 0
      %923 = vmatpush2.bf16.msra.mxu0 0
      %924 = vmatprep.subr.bf16.mxu0 0
      %925 = vmatpush2.bf16.msra.mxu0 0
      %926 = vmatprep.subr.bf16.mxu0 0
      %927 = vmatpush2.bf16.msra.mxu0 0
      %928 = vmatprep.subr.bf16.mxu0 0
      %929 = vmatpush2.bf16.msra.mxu0 0
      %930 = vmatprep.subr.bf16.mxu0 0
      %931 = vmatpush2.bf16.msra.mxu0 0
      %932 = vmatprep.subr.bf16.mxu0 0
      %933 = vmatpush2.bf16.msra.mxu0 0
      %934 = vmatprep.subr.bf16.mxu0 0
      %935 = vmatpush2.bf16.msra.mxu0 0
      %936 = vmatprep.subr.bf16.mxu0 0
      %937 = vmatpush2.bf16.msra.mxu0 0
      %938 = vmatprep.mubr.bf16.mxu0 0
      %939 = vmatmul.mubr.bf16.gmra.mxu0 %v602
      %v940 = vpop.f32.mrf.mxu0
      %v941 = vadd.f32 %v892, %v940
      %v942 = vpop.f32.mrf.mxu0
      %v943 = vpop.f32.mrf.mxu0
      %v944 = vpop.f32.mrf.mxu0
      %945 = vdwg.mxu0
      %s946 = scalar_lea.vmem %s5, 16
      %v947 = vld [vmem:[%s946] sm:$0xf]
      %v948 = vld [vmem:[%s946 + $0x4] sm:$0xf]
      %v949 = vld [vmem:[%s946 + $0x8] sm:$0xf]
      %v950 = vld [vmem:[%s946 + $0xc] sm:$0xf]
      %s951 = scalar_lea.vmem %s6, 1
      %v952 = vld [vmem:[%s951] sm:$0x1]
      %v954 = vlaneseq
      %v955 = vshrl.u32 %v954, 7
      %v956 = vsub.s32 0, %v955
      %v957 = vrot.slane %v952, %v956
      %v963 = vunpack.c.l.b16 %v947
      %v964 = vunpack.c.l.b16 %v948
      %v965 = vunpack.c.l.b16 %v949
      %v966 = vunpack.c.l.b16 %v950
      %v967 = vpack.c.b16 %v964, %v963
      %v968 = vpack.c.b16 %v966, %v965
      %971 = vmatprep.subr.bf16.mxu0 0
      %972 = vmatpush1.bf16.msra.mxu0 0
      %973 = vmatprep.subr.bf16.mxu0 0
      %974 = vmatpush1.bf16.msra.mxu0 0
      %975 = vmatprep.subr.bf16.mxu0 0
      %976 = vmatpush1.bf16.msra.mxu0 0
      %977 = vmatprep.subr.bf16.mxu0 0
      %978 = vmatpush1.bf16.msra.mxu0 0
      %979 = vmatprep.subr.bf16.mxu0 0
      %980 = vmatpush1.bf16.msra.mxu0 0
      %981 = vmatprep.subr.bf16.mxu0 0
      %982 = vmatpush1.bf16.msra.mxu0 0
      %983 = vmatprep.subr.bf16.mxu0 0
      %984 = vmatpush1.bf16.msra.mxu0 %v968
      %985 = vmatprep.subr.bf16.mxu0 0
      %986 = vmatpush1.bf16.msra.mxu0 %v967
      %987 = vmatprep.subr.bf16.mxu0 0
      %988 = vmatpush2.bf16.msra.mxu0 0
      %989 = vmatprep.subr.bf16.mxu0 0
      %990 = vmatpush2.bf16.msra.mxu0 0
      %991 = vmatprep.subr.bf16.mxu0 0
      %992 = vmatpush2.bf16.msra.mxu0 0
      %993 = vmatprep.subr.bf16.mxu0 0
      %994 = vmatpush2.bf16.msra.mxu0 0
      %995 = vmatprep.subr.bf16.mxu0 0
      %996 = vmatpush2.bf16.msra.mxu0 0
      %997 = vmatprep.subr.bf16.mxu0 0
      %998 = vmatpush2.bf16.msra.mxu0 0
      %999 = vmatprep.subr.bf16.mxu0 0
      %1000 = vmatpush2.bf16.msra.mxu0 0
      %1001 = vmatprep.subr.bf16.mxu0 0
      %1002 = vmatpush2.bf16.msra.mxu0 0
      %1003 = vmatprep.mubr.bf16.mxu0 0
      %1004 = vmatmul.mubr.bf16.gmra.mxu0 %v602
      %v1005 = vpop.f32.mrf.mxu0
      %v1006 = vadd.f32 %v957, %v1005
      %v1007 = vpop.f32.mrf.mxu0
      %v1008 = vpop.f32.mrf.mxu0
      %v1009 = vpop.f32.mrf.mxu0
      %1010 = vdwg.mxu0
      %s1011 = scalar_lea.vmem %s7, 16
      %v1012 = vld [vmem:[%s1011] sm:$0xf]
      %v1013 = vld [vmem:[%s1011 + $0x4] sm:$0xf]
      %v1014 = vld [vmem:[%s1011 + $0x8] sm:$0xf]
      %v1015 = vld [vmem:[%s1011 + $0xc] sm:$0xf]
      %s1016 = scalar_lea.vmem %s8, 1
      %v1017 = vld [vmem:[%s1016] sm:$0x1]
      %v1019 = vlaneseq
      %v1020 = vshrl.u32 %v1019, 7
      %v1021 = vsub.s32 0, %v1020
      %v1022 = vrot.slane %v1017, %v1021
      %v1028 = vunpack.c.l.b16 %v1012
      %v1029 = vunpack.c.l.b16 %v1013
      %v1030 = vunpack.c.l.b16 %v1014
      %v1031 = vunpack.c.l.b16 %v1015
      %v1032 = vpack.c.b16 %v1029, %v1028
      %v1033 = vpack.c.b16 %v1031, %v1030
      %1036 = vmatprep.subr.bf16.mxu0 0
      %1037 = vmatpush1.bf16.msra.mxu0 0
      %1038 = vmatprep.subr.bf16.mxu0 0
      %1039 = vmatpush1.bf16.msra.mxu0 0
      %1040 = vmatprep.subr.bf16.mxu0 0
      %1041 = vmatpush1.bf16.msra.mxu0 0
      %1042 = vmatprep.subr.bf16.mxu0 0
      %1043 = vmatpush1.bf16.msra.mxu0 0
      %1044 = vmatprep.subr.bf16.mxu0 0
      %1045 = vmatpush1.bf16.msra.mxu0 0
      %1046 = vmatprep.subr.bf16.mxu0 0
      %1047 = vmatpush1.bf16.msra.mxu0 0
      %1048 = vmatprep.subr.bf16.mxu0 0
      %1049 = vmatpush1.bf16.msra.mxu0 %v1033
      %1050 = vmatprep.subr.bf16.mxu0 0
      %1051 = vmatpush1.bf16.msra.mxu0 %v1032
      %1052 = vmatprep.subr.bf16.mxu0 0
      %1053 = vmatpush2.bf16.msra.mxu0 0
      %1054 = vmatprep.subr.bf16.mxu0 0
      %1055 = vmatpush2.bf16.msra.mxu0 0
      %1056 = vmatprep.subr.bf16.mxu0 0
      %1057 = vmatpush2.bf16.msra.mxu0 0
      %1058 = vmatprep.subr.bf16.mxu0 0
      %1059 = vmatpush2.bf16.msra.mxu0 0
      %1060 = vmatprep.subr.bf16.mxu0 0
      %1061 = vmatpush2.bf16.msra.mxu0 0
      %1062 = vmatprep.subr.bf16.mxu0 0
      %1063 = vmatpush2.bf16.msra.mxu0 0
      %1064 = vmatprep.subr.bf16.mxu0 0
      %1065 = vmatpush2.bf16.msra.mxu0 0
      %1066 = vmatprep.subr.bf16.mxu0 0
      %1067 = vmatpush2.bf16.msra.mxu0 0
      %1068 = vmatprep.mubr.bf16.mxu0 0
      %1069 = vmatmul.mubr.bf16.gmra.mxu0 %v602
      %v1070 = vpop.f32.mrf.mxu0
      %v1071 = vadd.f32 %v1022, %v1070
      %v1072 = vpop.f32.mrf.mxu0
      %v1073 = vpop.f32.mrf.mxu0
      %v1074 = vpop.f32.mrf.mxu0
      %1075 = vdwg.mxu0
      %v1076 = vpack.c.bf16 %v941, %v941
      %v1077 = vpack.c.bf16 %v1006, %v1006
      %v1079 = vsel %vm772, %v1076, 0
      %v1082 = vsel %vm772, %v1077, 0
      %1084 = vmatprep.subr.bf16.mxu0 0
      %1085 = vmatpush1.bf16.xpose.msra.mxu0 0
      %1086 = vmatprep.subr.bf16.mxu0 0
      %1087 = vmatpush1.bf16.xpose.msra.mxu0 0
      %1088 = vmatprep.subr.bf16.mxu0 0
      %1089 = vmatpush1.bf16.xpose.msra.mxu0 0
      %1090 = vmatprep.subr.bf16.mxu0 0
      %1091 = vmatpush1.bf16.xpose.msra.mxu0 0
      %1092 = vmatprep.subr.bf16.mxu0 0
      %1093 = vmatpush1.bf16.xpose.msra.mxu0 0
      %1094 = vmatprep.subr.bf16.mxu0 0
      %1095 = vmatpush1.bf16.xpose.msra.mxu0 0
      %1096 = vmatprep.subr.bf16.mxu0 0
      %1097 = vmatpush1.bf16.xpose.msra.mxu0 0
      %1098 = vmatprep.subr.bf16.mxu0 0
      %1099 = vmatpush1.bf16.xpose.msra.mxu0 %v1082
      %1100 = vmatprep.subr.bf16.mxu0 0
      %1101 = vmatpush2.bf16.xpose.msra.mxu0 0
      %1102 = vmatprep.subr.bf16.mxu0 0
      %1103 = vmatpush2.bf16.xpose.msra.mxu0 0
      %1104 = vmatprep.subr.bf16.mxu0 0
      %1105 = vmatpush2.bf16.xpose.msra.mxu0 0
      %1106 = vmatprep.subr.bf16.mxu0 0
      %1107 = vmatpush2.bf16.xpose.msra.mxu0 0
      %1108 = vmatprep.subr.bf16.mxu0 0
      %1109 = vmatpush2.bf16.xpose.msra.mxu0 0
      %1110 = vmatprep.subr.bf16.mxu0 0
      %1111 = vmatpush2.bf16.xpose.msra.mxu0 0
      %1112 = vmatprep.subr.bf16.mxu0 0
      %1113 = vmatpush2.bf16.xpose.msra.mxu0 0
      %1114 = vmatprep.subr.bf16.mxu0 0
      %1115 = vmatpush2.bf16.xpose.msra.mxu0 0
      %1116 = vmatprep.mubr.bf16.mxu0 0
      %1117 = vmatmul.mubr.bf16.gmra.mxu0 %v1079
      %v1118 = vpop.f32.mrf.mxu0
      %v1119 = vadd.f32 0.0, %v1118
      %v1120 = vpop.f32.mrf.mxu0
      %v1121 = vpop.f32.mrf.mxu0
      %v1122 = vpop.f32.mrf.mxu0
      %1123 = vdwg.mxu0
      %v1124 = vsel %vm772, %v1119, -inf
      %1125 = vmax.xlane.f32.xlu0 %v1124
      %v1126 = vpop.xlane.xlu0 %1125
      %v1127 = vsub.f32 %v1119, %v1126
      %v1128 = vmul.f32 %v1127, 1.442695
      %v1129 = vpow.pop %v1128
      %v1130 = vsel %vm772, %v1129, 0.0
      %1131 = vadd.xlane.f32.xlu0 %v1130
      %v1132 = vpop.xlane.xlu0 %1131
      %v1133 = vrcp.pop %v1132
      %v1134 = vmul.f32 %v1129, %v1133
      %v1135 = vpack.c.bf16 %v1134, %v1134
      %v1136 = vpack.c.bf16 %v1071, %v1071
      %v1138 = vsel %vm772, %v1135, 0
      %v1141 = vsel %vm835, %v1136, 0
      %1143 = vmatprep.subr.bf16.mxu0 0
      %1144 = vmatpush1.bf16.msra.mxu0 0
      %1145 = vmatprep.subr.bf16.mxu0 0
      %1146 = vmatpush1.bf16.msra.mxu0 0
      %1147 = vmatprep.subr.bf16.mxu0 0
      %1148 = vmatpush1.bf16.msra.mxu0 0
      %1149 = vmatprep.subr.bf16.mxu0 0
      %1150 = vmatpush1.bf16.msra.mxu0 0
      %1151 = vmatprep.subr.bf16.mxu0 0
      %1152 = vmatpush1.bf16.msra.mxu0 0
      %1153 = vmatprep.subr.bf16.mxu0 0
      %1154 = vmatpush1.bf16.msra.mxu0 0
      %1155 = vmatprep.subr.bf16.mxu0 0
      %1156 = vmatpush1.bf16.msra.mxu0 0
      %1157 = vmatprep.subr.bf16.mxu0 0
      %1158 = vmatpush1.bf16.msra.mxu0 %v1141
      %1159 = vmatprep.subr.bf16.mxu0 0
      %1160 = vmatpush2.bf16.msra.mxu0 0
      %1161 = vmatprep.subr.bf16.mxu0 0
      %1162 = vmatpush2.bf16.msra.mxu0 0
      %1163 = vmatprep.subr.bf16.mxu0 0
      %1164 = vmatpush2.bf16.msra.mxu0 0
      %1165 = vmatprep.subr.bf16.mxu0 0
      %1166 = vmatpush2.bf16.msra.mxu0 0
      %1167 = vmatprep.subr.bf16.mxu0 0
      %1168 = vmatpush2.bf16.msra.mxu0 0
      %1169 = vmatprep.subr.bf16.mxu0 0
      %1170 = vmatpush2.bf16.msra.mxu0 0
      %1171 = vmatprep.subr.bf16.mxu0 0
      %1172 = vmatpush2.bf16.msra.mxu0 0
      %1173 = vmatprep.subr.bf16.mxu0 0
      %1174 = vmatpush2.bf16.msra.mxu0 0
      %1175 = vmatprep.mubr.bf16.mxu0 0
      %1176 = vmatmul.mubr.bf16.gmra.mxu0 %v1138
      %v1177 = vpop.f32.mrf.mxu0
      %v1178 = vadd.f32 0.0, %v1177
      %v1179 = vpop.f32.mrf.mxu0
      %v1180 = vpop.f32.mrf.mxu0
      %v1181 = vpop.f32.mrf.mxu0
      %1182 = vdwg.mxu0
      %v1183 = vpack.c.bf16 %v1178, %v1178
      %s1184 = scalar_lea.vmem %s9, 4
      %v1185 = vld [vmem:[%s1184] sm:$0xf]
      %v1187 = vsel %vm772, %v1183, 0
      %v1190 = vsel %vm835, %v1185, 0
      %1192 = vmatprep.subr.bf16.mxu0 0
      %1193 = vmatpush1.bf16.msra.mxu0 0
      %1194 = vmatprep.subr.bf16.mxu0 0
      %1195 = vmatpush1.bf16.msra.mxu0 0
      %1196 = vmatprep.subr.bf16.mxu0 0
      %1197 = vmatpush1.bf16.msra.mxu0 0
      %1198 = vmatprep.subr.bf16.mxu0 0
      %1199 = vmatpush1.bf16.msra.mxu0 0
      %1200 = vmatprep.subr.bf16.mxu0 0
      %1201 = vmatpush1.bf16.msra.mxu0 0
      %1202 = vmatprep.subr.bf16.mxu0 0
      %1203 = vmatpush1.bf16.msra.mxu0 0
      %1204 = vmatprep.subr.bf16.mxu0 0
      %1205 = vmatpush1.bf16.msra.mxu0 0
      %1206 = vmatprep.subr.bf16.mxu0 0
      %1207 = vmatpush1.bf16.msra.mxu0 %v1190
      %1208 = vmatprep.subr.bf16.mxu0 0
      %1209 = vmatpush2.bf16.msra.mxu0 0
      %1210 = vmatprep.subr.bf16.mxu0 0
      %1211 = vmatpush2.bf16.msra.mxu0 0
      %1212 = vmatprep.subr.bf16.mxu0 0
      %1213 = vmatpush2.bf16.msra.mxu0 0
      %1214 = vmatprep.subr.bf16.mxu0 0
      %1215 = vmatpush2.bf16.msra.mxu0 0
      %1216 = vmatprep.subr.bf16.mxu0 0
      %1217 = vmatpush2.bf16.msra.mxu0 0
      %1218 = vmatprep.subr.bf16.mxu0 0
      %1219 = vmatpush2.bf16.msra.mxu0 0
      %1220 = vmatprep.subr.bf16.mxu0 0
      %1221 = vmatpush2.bf16.msra.mxu0 0
      %1222 = vmatprep.subr.bf16.mxu0 0
      %1223 = vmatpush2.bf16.msra.mxu0 0
      %1224 = vmatprep.mubr.bf16.mxu0 0
      %1225 = vmatmul.mubr.bf16.gmra.mxu0 %v1187
      %v1226 = vpop.f32.mrf.mxu0
      %v1227 = vadd.f32 0.0, %v1226
      %v1228 = vpop.f32.mrf.mxu0
      %v1229 = vpop.f32.mrf.mxu0
      %v1230 = vpop.f32.mrf.mxu0
      %1231 = vdwg.mxu0
      %v1233 = vsel %vm772, %v879, 0
      %v1236 = vsel %vm835, %v880, 0
      %1238 = vmatprep.subr.bf16.mxu0 0
      %1239 = vmatpush1.bf16.msra.mxu0 0
      %1240 = vmatprep.subr.bf16.mxu0 0
      %1241 = vmatpush1.bf16.msra.mxu0 0
      %1242 = vmatprep.subr.bf16.mxu0 0
      %1243 = vmatpush1.bf16.msra.mxu0 0
      %1244 = vmatprep.subr.bf16.mxu0 0
      %1245 = vmatpush1.bf16.msra.mxu0 0
      %1246 = vmatprep.subr.bf16.mxu0 0
      %1247 = vmatpush1.bf16.msra.mxu0 0
      %1248 = vmatprep.subr.bf16.mxu0 0
      %1249 = vmatpush1.bf16.msra.mxu0 0
      %1250 = vmatprep.subr.bf16.mxu0 0
      %1251 = vmatpush1.bf16.msra.mxu0 0
      %1252 = vmatprep.subr.bf16.mxu0 0
      %1253 = vmatpush1.bf16.msra.mxu0 %v1236
      %1254 = vmatprep.subr.bf16.mxu0 0
      %1255 = vmatpush2.bf16.msra.mxu0 0
      %1256 = vmatprep.subr.bf16.mxu0 0
      %1257 = vmatpush2.bf16.msra.mxu0 0
      %1258 = vmatprep.subr.bf16.mxu0 0
      %1259 = vmatpush2.bf16.msra.mxu0 0
      %1260 = vmatprep.subr.bf16.mxu0 0
      %1261 = vmatpush2.bf16.msra.mxu0 0
      %1262 = vmatprep.subr.bf16.mxu0 0
      %1263 = vmatpush2.bf16.msra.mxu0 0
      %1264 = vmatprep.subr.bf16.mxu0 0
      %1265 = vmatpush2.bf16.msra.mxu0 0
      %1266 = vmatprep.subr.bf16.mxu0 0
      %1267 = vmatpush2.bf16.msra.mxu0 0
      %1268 = vmatprep.subr.bf16.mxu0 0
      %1269 = vmatpush2.bf16.msra.mxu0 0
      %1270 = vmatprep.mubr.bf16.mxu0 0
      %1271 = vmatmul.mubr.bf16.gmra.mxu0 %v1233
      %v1272 = vpop.f32.mrf.mxu0
      %v1273 = vadd.f32 %v1227, %v1272
      %v1274 = vpop.f32.mrf.mxu0
      %v1275 = vpop.f32.mrf.mxu0
      %v1276 = vpop.f32.mrf.mxu0
      %1277 = vdwg.mxu0
      %s1278 = scalar_lea.vmem %s3, 32
      %v1279 = vld [vmem:[%s1278] sm:$0xf]
      %v1280 = vld [vmem:[%s1278 + $0x4] sm:$0xf]
      %v1281 = vld [vmem:[%s1278 + $0x8] sm:$0xf]
      %v1282 = vld [vmem:[%s1278 + $0xc] sm:$0xf]
      %s1283 = scalar_lea.vmem %s4, 2
      %v1284 = vld [vmem:[%s1283] sm:$0x1]
      %v1286 = vlaneseq
      %v1287 = vshrl.u32 %v1286, 7
      %v1288 = vsub.s32 0, %v1287
      %v1289 = vrot.slane %v1284, %v1288
      %v1295 = vunpack.c.l.b16 %v1279
      %v1296 = vunpack.c.l.b16 %v1280
      %v1297 = vunpack.c.l.b16 %v1281
      %v1298 = vunpack.c.l.b16 %v1282
      %v1299 = vpack.c.b16 %v1296, %v1295
      %v1300 = vpack.c.b16 %v1298, %v1297
      %1303 = vmatprep.subr.bf16.mxu0 0
      %1304 = vmatpush1.bf16.msra.mxu0 0
      %1305 = vmatprep.subr.bf16.mxu0 0
      %1306 = vmatpush1.bf16.msra.mxu0 0
      %1307 = vmatprep.subr.bf16.mxu0 0
      %1308 = vmatpush1.bf16.msra.mxu0 0
      %1309 = vmatprep.subr.bf16.mxu0 0
      %1310 = vmatpush1.bf16.msra.mxu0 0
      %1311 = vmatprep.subr.bf16.mxu0 0
      %1312 = vmatpush1.bf16.msra.mxu0 0
      %1313 = vmatprep.subr.bf16.mxu0 0
      %1314 = vmatpush1.bf16.msra.mxu0 0
      %1315 = vmatprep.subr.bf16.mxu0 0
      %1316 = vmatpush1.bf16.msra.mxu0 %v1300
      %1317 = vmatprep.subr.bf16.mxu0 0
      %1318 = vmatpush1.bf16.msra.mxu0 %v1299
      %1319 = vmatprep.subr.bf16.mxu0 0
      %1320 = vmatpush2.bf16.msra.mxu0 0
      %1321 = vmatprep.subr.bf16.mxu0 0
      %1322 = vmatpush2.bf16.msra.mxu0 0
      %1323 = vmatprep.subr.bf16.mxu0 0
      %1324 = vmatpush2.bf16.msra.mxu0 0
      %1325 = vmatprep.subr.bf16.mxu0 0
      %1326 = vmatpush2.bf16.msra.mxu0 0
      %1327 = vmatprep.subr.bf16.mxu0 0
      %1328 = vmatpush2.bf16.msra.mxu0 0
      %1329 = vmatprep.subr.bf16.mxu0 0
      %1330 = vmatpush2.bf16.msra.mxu0 0
      %1331 = vmatprep.subr.bf16.mxu0 0
      %1332 = vmatpush2.bf16.msra.mxu0 0
      %1333 = vmatprep.subr.bf16.mxu0 0
      %1334 = vmatpush2.bf16.msra.mxu0 0
      %1335 = vmatprep.mubr.bf16.mxu0 0
      %1336 = vmatmul.mubr.bf16.gmra.mxu0 %v602
      %v1337 = vpop.f32.mrf.mxu0
      %v1338 = vadd.f32 %v1289, %v1337
      %v1339 = vpop.f32.mrf.mxu0
      %v1340 = vpop.f32.mrf.mxu0
      %v1341 = vpop.f32.mrf.mxu0
      %1342 = vdwg.mxu0
      %s1343 = scalar_lea.vmem %s5, 32
      %v1344 = vld [vmem:[%s1343] sm:$0xf]
      %v1345 = vld [vmem:[%s1343 + $0x4] sm:$0xf]
      %v1346 = vld [vmem:[%s1343 + $0x8] sm:$0xf]
      %v1347 = vld [vmem:[%s1343 + $0xc] sm:$0xf]
      %s1348 = scalar_lea.vmem %s6, 2
      %v1349 = vld [vmem:[%s1348] sm:$0x1]
      %v1351 = vlaneseq
      %v1352 = vshrl.u32 %v1351, 7
      %v1353 = vsub.s32 0, %v1352
      %v1354 = vrot.slane %v1349, %v1353
      %v1360 = vunpack.c.l.b16 %v1344
      %v1361 = vunpack.c.l.b16 %v1345
      %v1362 = vunpack.c.l.b16 %v1346
      %v1363 = vunpack.c.l.b16 %v1347
      %v1364 = vpack.c.b16 %v1361, %v1360
      %v1365 = vpack.c.b16 %v1363, %v1362
      %1368 = vmatprep.subr.bf16.mxu0 0
      %1369 = vmatpush1.bf16.msra.mxu0 0
      %1370 = vmatprep.subr.bf16.mxu0 0
      %1371 = vmatpush1.bf16.msra.mxu0 0
      %1372 = vmatprep.subr.bf16.mxu0 0
      %1373 = vmatpush1.bf16.msra.mxu0 0
      %1374 = vmatprep.subr.bf16.mxu0 0
      %1375 = vmatpush1.bf16.msra.mxu0 0
      %1376 = vmatprep.subr.bf16.mxu0 0
      %1377 = vmatpush1.bf16.msra.mxu0 0
      %1378 = vmatprep.subr.bf16.mxu0 0
      %1379 = vmatpush1.bf16.msra.mxu0 0
      %1380 = vmatprep.subr.bf16.mxu0 0
      %1381 = vmatpush1.bf16.msra.mxu0 %v1365
      %1382 = vmatprep.subr.bf16.mxu0 0
      %1383 = vmatpush1.bf16.msra.mxu0 %v1364
      %1384 = vmatprep.subr.bf16.mxu0 0
      %1385 = vmatpush2.bf16.msra.mxu0 0
      %1386 = vmatprep.subr.bf16.mxu0 0
      %1387 = vmatpush2.bf16.msra.mxu0 0
      %1388 = vmatprep.subr.bf16.mxu0 0
      %1389 = vmatpush2.bf16.msra.mxu0 0
      %1390 = vmatprep.subr.bf16.mxu0 0
      %1391 = vmatpush2.bf16.msra.mxu0 0
      %1392 = vmatprep.subr.bf16.mxu0 0
      %1393 = vmatpush2.bf16.msra.mxu0 0
      %1394 = vmatprep.subr.bf16.mxu0 0
      %1395 = vmatpush2.bf16.msra.mxu0 0
      %1396 = vmatprep.subr.bf16.mxu0 0
      %1397 = vmatpush2.bf16.msra.mxu0 0
      %1398 = vmatprep.subr.bf16.mxu0 0
      %1399 = vmatpush2.bf16.msra.mxu0 0
      %1400 = vmatprep.mubr.bf16.mxu0 0
      %1401 = vmatmul.mubr.bf16.gmra.mxu0 %v602
      %v1402 = vpop.f32.mrf.mxu0
      %v1403 = vadd.f32 %v1354, %v1402
      %v1404 = vpop.f32.mrf.mxu0
      %v1405 = vpop.f32.mrf.mxu0
      %v1406 = vpop.f32.mrf.mxu0
      %1407 = vdwg.mxu0
      %s1408 = scalar_lea.vmem %s7, 32
      %v1409 = vld [vmem:[%s1408] sm:$0xf]
      %v1410 = vld [vmem:[%s1408 + $0x4] sm:$0xf]
      %v1411 = vld [vmem:[%s1408 + $0x8] sm:$0xf]
      %v1412 = vld [vmem:[%s1408 + $0xc] sm:$0xf]
      %s1413 = scalar_lea.vmem %s8, 2
      %v1414 = vld [vmem:[%s1413] sm:$0x1]
      %v1416 = vlaneseq
      %v1417 = vshrl.u32 %v1416, 7
      %v1418 = vsub.s32 0, %v1417
      %v1419 = vrot.slane %v1414, %v1418
      %v1425 = vunpack.c.l.b16 %v1409
      %v1426 = vunpack.c.l.b16 %v1410
      %v1427 = vunpack.c.l.b16 %v1411
      %v1428 = vunpack.c.l.b16 %v1412
      %v1429 = vpack.c.b16 %v1426, %v1425
      %v1430 = vpack.c.b16 %v1428, %v1427
      %1433 = vmatprep.subr.bf16.mxu0 0
      %1434 = vmatpush1.bf16.msra.mxu0 0
      %1435 = vmatprep.subr.bf16.mxu0 0
      %1436 = vmatpush1.bf16.msra.mxu0 0
      %1437 = vmatprep.subr.bf16.mxu0 0
      %1438 = vmatpush1.bf16.msra.mxu0 0
      %1439 = vmatprep.subr.bf16.mxu0 0
      %1440 = vmatpush1.bf16.msra.mxu0 0
      %1441 = vmatprep.subr.bf16.mxu0 0
      %1442 = vmatpush1.bf16.msra.mxu0 0
      %1443 = vmatprep.subr.bf16.mxu0 0
      %1444 = vmatpush1.bf16.msra.mxu0 0
      %1445 = vmatprep.subr.bf16.mxu0 0
      %1446 = vmatpush1.bf16.msra.mxu0 %v1430
      %1447 = vmatprep.subr.bf16.mxu0 0
      %1448 = vmatpush1.bf16.msra.mxu0 %v1429
      %1449 = vmatprep.subr.bf16.mxu0 0
      %1450 = vmatpush2.bf16.msra.mxu0 0
      %1451 = vmatprep.subr.bf16.mxu0 0
      %1452 = vmatpush2.bf16.msra.mxu0 0
      %1453 = vmatprep.subr.bf16.mxu0 0
      %1454 = vmatpush2.bf16.msra.mxu0 0
      %1455 = vmatprep.subr.bf16.mxu0 0
      %1456 = vmatpush2.bf16.msra.mxu0 0
      %1457 = vmatprep.subr.bf16.mxu0 0
      %1458 = vmatpush2.bf16.msra.mxu0 0
      %1459 = vmatprep.subr.bf16.mxu0 0
      %1460 = vmatpush2.bf16.msra.mxu0 0
      %1461 = vmatprep.subr.bf16.mxu0 0
      %1462 = vmatpush2.bf16.msra.mxu0 0
      %1463 = vmatprep.subr.bf16.mxu0 0
      %1464 = vmatpush2.bf16.msra.mxu0 0
      %1465 = vmatprep.mubr.bf16.mxu0 0
      %1466 = vmatmul.mubr.bf16.gmra.mxu0 %v602
      %v1467 = vpop.f32.mrf.mxu0
      %v1468 = vadd.f32 %v1419, %v1467
      %v1469 = vpop.f32.mrf.mxu0
      %v1470 = vpop.f32.mrf.mxu0
      %v1471 = vpop.f32.mrf.mxu0
      %1472 = vdwg.mxu0
      %v1473 = vpack.c.bf16 %v1338, %v1338
      %v1474 = vpack.c.bf16 %v1403, %v1403
      %v1476 = vsel %vm772, %v1473, 0
      %v1479 = vsel %vm772, %v1474, 0
      %1481 = vmatprep.subr.bf16.mxu0 0
      %1482 = vmatpush1.bf16.xpose.msra.mxu0 0
      %1483 = vmatprep.subr.bf16.mxu0 0
      %1484 = vmatpush1.bf16.xpose.msra.mxu0 0
      %1485 = vmatprep.subr.bf16.mxu0 0
      %1486 = vmatpush1.bf16.xpose.msra.mxu0 0
      %1487 = vmatprep.subr.bf16.mxu0 0
      %1488 = vmatpush1.bf16.xpose.msra.mxu0 0
      %1489 = vmatprep.subr.bf16.mxu0 0
      %1490 = vmatpush1.bf16.xpose.msra.mxu0 0
      %1491 = vmatprep.subr.bf16.mxu0 0
      %1492 = vmatpush1.bf16.xpose.msra.mxu0 0
      %1493 = vmatprep.subr.bf16.mxu0 0
      %1494 = vmatpush1.bf16.xpose.msra.mxu0 0
      %1495 = vmatprep.subr.bf16.mxu0 0
      %1496 = vmatpush1.bf16.xpose.msra.mxu0 %v1479
      %1497 = vmatprep.subr.bf16.mxu0 0
      %1498 = vmatpush2.bf16.xpose.msra.mxu0 0
      %1499 = vmatprep.subr.bf16.mxu0 0
      %1500 = vmatpush2.bf16.xpose.msra.mxu0 0
      %1501 = vmatprep.subr.bf16.mxu0 0
      %1502 = vmatpush2.bf16.xpose.msra.mxu0 0
      %1503 = vmatprep.subr.bf16.mxu0 0
      %1504 = vmatpush2.bf16.xpose.msra.mxu0 0
      %1505 = vmatprep.subr.bf16.mxu0 0
      %1506 = vmatpush2.bf16.xpose.msra.mxu0 0
      %1507 = vmatprep.subr.bf16.mxu0 0
      %1508 = vmatpush2.bf16.xpose.msra.mxu0 0
      %1509 = vmatprep.subr.bf16.mxu0 0
      %1510 = vmatpush2.bf16.xpose.msra.mxu0 0
      %1511 = vmatprep.subr.bf16.mxu0 0
      %1512 = vmatpush2.bf16.xpose.msra.mxu0 0
      %1513 = vmatprep.mubr.bf16.mxu0 0
      %1514 = vmatmul.mubr.bf16.gmra.mxu0 %v1476
      %v1515 = vpop.f32.mrf.mxu0
      %v1516 = vadd.f32 0.0, %v1515
      %v1517 = vpop.f32.mrf.mxu0
      %v1518 = vpop.f32.mrf.mxu0
      %v1519 = vpop.f32.mrf.mxu0
      %1520 = vdwg.mxu0
      %v1521 = vsel %vm772, %v1516, -inf
      %1522 = vmax.xlane.f32.xlu0 %v1521
      %v1523 = vpop.xlane.xlu0 %1522
      %v1524 = vsub.f32 %v1516, %v1523
      %v1525 = vmul.f32 %v1524, 1.442695
      %v1526 = vpow.pop %v1525
      %v1527 = vsel %vm772, %v1526, 0.0
      %1528 = vadd.xlane.f32.xlu0 %v1527
      %v1529 = vpop.xlane.xlu0 %1528
      %v1530 = vrcp.pop %v1529
      %v1531 = vmul.f32 %v1526, %v1530
      %v1532 = vpack.c.bf16 %v1531, %v1531
      %v1533 = vpack.c.bf16 %v1468, %v1468
      %v1535 = vsel %vm772, %v1532, 0
      %v1538 = vsel %vm835, %v1533, 0
      %1540 = vmatprep.subr.bf16.mxu0 0
      %1541 = vmatpush1.bf16.msra.mxu0 0
      %1542 = vmatprep.subr.bf16.mxu0 0
      %1543 = vmatpush1.bf16.msra.mxu0 0
      %1544 = vmatprep.subr.bf16.mxu0 0
      %1545 = vmatpush1.bf16.msra.mxu0 0
      %1546 = vmatprep.subr.bf16.mxu0 0
      %1547 = vmatpush1.bf16.msra.mxu0 0
      %1548 = vmatprep.subr.bf16.mxu0 0
      %1549 = vmatpush1.bf16.msra.mxu0 0
      %1550 = vmatprep.subr.bf16.mxu0 0
      %1551 = vmatpush1.bf16.msra.mxu0 0
      %1552 = vmatprep.subr.bf16.mxu0 0
      %1553 = vmatpush1.bf16.msra.mxu0 0
      %1554 = vmatprep.subr.bf16.mxu0 0
      %1555 = vmatpush1.bf16.msra.mxu0 %v1538
      %1556 = vmatprep.subr.bf16.mxu0 0
      %1557 = vmatpush2.bf16.msra.mxu0 0
      %1558 = vmatprep.subr.bf16.mxu0 0
      %1559 = vmatpush2.bf16.msra.mxu0 0
      %1560 = vmatprep.subr.bf16.mxu0 0
      %1561 = vmatpush2.bf16.msra.mxu0 0
      %1562 = vmatprep.subr.bf16.mxu0 0
      %1563 = vmatpush2.bf16.msra.mxu0 0
      %1564 = vmatprep.subr.bf16.mxu0 0
      %1565 = vmatpush2.bf16.msra.mxu0 0
      %1566 = vmatprep.subr.bf16.mxu0 0
      %1567 = vmatpush2.bf16.msra.mxu0 0
      %1568 = vmatprep.subr.bf16.mxu0 0
      %1569 = vmatpush2.bf16.msra.mxu0 0
      %1570 = vmatprep.subr.bf16.mxu0 0
      %1571 = vmatpush2.bf16.msra.mxu0 0
      %1572 = vmatprep.mubr.bf16.mxu0 0
      %1573 = vmatmul.mubr.bf16.gmra.mxu0 %v1535
      %v1574 = vpop.f32.mrf.mxu0
      %v1575 = vadd.f32 0.0, %v1574
      %v1576 = vpop.f32.mrf.mxu0
      %v1577 = vpop.f32.mrf.mxu0
      %v1578 = vpop.f32.mrf.mxu0
      %1579 = vdwg.mxu0
      %v1580 = vpack.c.bf16 %v1575, %v1575
      %s1581 = scalar_lea.vmem %s9, 8
      %v1582 = vld [vmem:[%s1581] sm:$0xf]
      %v1584 = vsel %vm772, %v1580, 0
      %v1587 = vsel %vm835, %v1582, 0
      %1589 = vmatprep.subr.bf16.mxu0 0
      %1590 = vmatpush1.bf16.msra.mxu0 0
      %1591 = vmatprep.subr.bf16.mxu0 0
      %1592 = vmatpush1.bf16.msra.mxu0 0
      %1593 = vmatprep.subr.bf16.mxu0 0
      %1594 = vmatpush1.bf16.msra.mxu0 0
      %1595 = vmatprep.subr.bf16.mxu0 0
      %1596 = vmatpush1.bf16.msra.mxu0 0
      %1597 = vmatprep.subr.bf16.mxu0 0
      %1598 = vmatpush1.bf16.msra.mxu0 0
      %1599 = vmatprep.subr.bf16.mxu0 0
      %1600 = vmatpush1.bf16.msra.mxu0 0
      %1601 = vmatprep.subr.bf16.mxu0 0
      %1602 = vmatpush1.bf16.msra.mxu0 0
      %1603 = vmatprep.subr.bf16.mxu0 0
      %1604 = vmatpush1.bf16.msra.mxu0 %v1587
      %1605 = vmatprep.subr.bf16.mxu0 0
      %1606 = vmatpush2.bf16.msra.mxu0 0
      %1607 = vmatprep.subr.bf16.mxu0 0
      %1608 = vmatpush2.bf16.msra.mxu0 0
      %1609 = vmatprep.subr.bf16.mxu0 0
      %1610 = vmatpush2.bf16.msra.mxu0 0
      %1611 = vmatprep.subr.bf16.mxu0 0
      %1612 = vmatpush2.bf16.msra.mxu0 0
      %1613 = vmatprep.subr.bf16.mxu0 0
      %1614 = vmatpush2.bf16.msra.mxu0 0
      %1615 = vmatprep.subr.bf16.mxu0 0
      %1616 = vmatpush2.bf16.msra.mxu0 0
      %1617 = vmatprep.subr.bf16.mxu0 0
      %1618 = vmatpush2.bf16.msra.mxu0 0
      %1619 = vmatprep.subr.bf16.mxu0 0
      %1620 = vmatpush2.bf16.msra.mxu0 0
      %1621 = vmatprep.mubr.bf16.mxu0 0
      %1622 = vmatmul.mubr.bf16.gmra.mxu0 %v1584
      %v1623 = vpop.f32.mrf.mxu0
      %v1624 = vadd.f32 0.0, %v1623
      %v1625 = vpop.f32.mrf.mxu0
      %v1626 = vpop.f32.mrf.mxu0
      %v1627 = vpop.f32.mrf.mxu0
      %1628 = vdwg.mxu0
      %v1629 = vadd.f32 %v1273, %v1624
      %s1630 = scalar_lea.vmem %s3, 48
      %v1631 = vld [vmem:[%s1630] sm:$0xf]
      %v1632 = vld [vmem:[%s1630 + $0x4] sm:$0xf]
      %v1633 = vld [vmem:[%s1630 + $0x8] sm:$0xf]
      %v1634 = vld [vmem:[%s1630 + $0xc] sm:$0xf]
      %s1635 = scalar_lea.vmem %s4, 3
      %v1636 = vld [vmem:[%s1635] sm:$0x1]
      %v1638 = vlaneseq
      %v1639 = vshrl.u32 %v1638, 7
      %v1640 = vsub.s32 0, %v1639
      %v1641 = vrot.slane %v1636, %v1640
      %v1647 = vunpack.c.l.b16 %v1631
      %v1648 = vunpack.c.l.b16 %v1632
      %v1649 = vunpack.c.l.b16 %v1633
      %v1650 = vunpack.c.l.b16 %v1634
      %v1651 = vpack.c.b16 %v1648, %v1647
      %v1652 = vpack.c.b16 %v1650, %v1649
      %1655 = vmatprep.subr.bf16.mxu0 0
      %1656 = vmatpush1.bf16.msra.mxu0 0
      %1657 = vmatprep.subr.bf16.mxu0 0
      %1658 = vmatpush1.bf16.msra.mxu0 0
      %1659 = vmatprep.subr.bf16.mxu0 0
      %1660 = vmatpush1.bf16.msra.mxu0 0
      %1661 = vmatprep.subr.bf16.mxu0 0
      %1662 = vmatpush1.bf16.msra.mxu0 0
      %1663 = vmatprep.subr.bf16.mxu0 0
      %1664 = vmatpush1.bf16.msra.mxu0 0
      %1665 = vmatprep.subr.bf16.mxu0 0
      %1666 = vmatpush1.bf16.msra.mxu0 0
      %1667 = vmatprep.subr.bf16.mxu0 0
      %1668 = vmatpush1.bf16.msra.mxu0 %v1652
      %1669 = vmatprep.subr.bf16.mxu0 0
      %1670 = vmatpush1.bf16.msra.mxu0 %v1651
      %1671 = vmatprep.subr.bf16.mxu0 0
      %1672 = vmatpush2.bf16.msra.mxu0 0
      %1673 = vmatprep.subr.bf16.mxu0 0
      %1674 = vmatpush2.bf16.msra.mxu0 0
      %1675 = vmatprep.subr.bf16.mxu0 0
      %1676 = vmatpush2.bf16.msra.mxu0 0
      %1677 = vmatprep.subr.bf16.mxu0 0
      %1678 = vmatpush2.bf16.msra.mxu0 0
      %1679 = vmatprep.subr.bf16.mxu0 0
      %1680 = vmatpush2.bf16.msra.mxu0 0
      %1681 = vmatprep.subr.bf16.mxu0 0
      %1682 = vmatpush2.bf16.msra.mxu0 0
      %1683 = vmatprep.subr.bf16.mxu0 0
      %1684 = vmatpush2.bf16.msra.mxu0 0
      %1685 = vmatprep.subr.bf16.mxu0 0
      %1686 = vmatpush2.bf16.msra.mxu0 0
      %1687 = vmatprep.mubr.bf16.mxu0 0
      %1688 = vmatmul.mubr.bf16.gmra.mxu0 %v602
      %v1689 = vpop.f32.mrf.mxu0
      %v1690 = vadd.f32 %v1641, %v1689
      %v1691 = vpop.f32.mrf.mxu0
      %v1692 = vpop.f32.mrf.mxu0
      %v1693 = vpop.f32.mrf.mxu0
      %1694 = vdwg.mxu0
      %s1695 = scalar_lea.vmem %s5, 48
      %v1696 = vld [vmem:[%s1695] sm:$0xf]
      %v1697 = vld [vmem:[%s1695 + $0x4] sm:$0xf]
      %v1698 = vld [vmem:[%s1695 + $0x8] sm:$0xf]
      %v1699 = vld [vmem:[%s1695 + $0xc] sm:$0xf]
      %s1700 = scalar_lea.vmem %s6, 3
      %v1701 = vld [vmem:[%s1700] sm:$0x1]
      %v1703 = vlaneseq
      %v1704 = vshrl.u32 %v1703, 7
      %v1705 = vsub.s32 0, %v1704
      %v1706 = vrot.slane %v1701, %v1705
      %v1712 = vunpack.c.l.b16 %v1696
      %v1713 = vunpack.c.l.b16 %v1697
      %v1714 = vunpack.c.l.b16 %v1698
      %v1715 = vunpack.c.l.b16 %v1699
      %v1716 = vpack.c.b16 %v1713, %v1712
      %v1717 = vpack.c.b16 %v1715, %v1714
      %1720 = vmatprep.subr.bf16.mxu0 0
      %1721 = vmatpush1.bf16.msra.mxu0 0
      %1722 = vmatprep.subr.bf16.mxu0 0
      %1723 = vmatpush1.bf16.msra.mxu0 0
      %1724 = vmatprep.subr.bf16.mxu0 0
      %1725 = vmatpush1.bf16.msra.mxu0 0
      %1726 = vmatprep.subr.bf16.mxu0 0
      %1727 = vmatpush1.bf16.msra.mxu0 0
      %1728 = vmatprep.subr.bf16.mxu0 0
      %1729 = vmatpush1.bf16.msra.mxu0 0
      %1730 = vmatprep.subr.bf16.mxu0 0
      %1731 = vmatpush1.bf16.msra.mxu0 0
      %1732 = vmatprep.subr.bf16.mxu0 0
      %1733 = vmatpush1.bf16.msra.mxu0 %v1717
      %1734 = vmatprep.subr.bf16.mxu0 0
      %1735 = vmatpush1.bf16.msra.mxu0 %v1716
      %1736 = vmatprep.subr.bf16.mxu0 0
      %1737 = vmatpush2.bf16.msra.mxu0 0
      %1738 = vmatprep.subr.bf16.mxu0 0
      %1739 = vmatpush2.bf16.msra.mxu0 0
      %1740 = vmatprep.subr.bf16.mxu0 0
      %1741 = vmatpush2.bf16.msra.mxu0 0
      %1742 = vmatprep.subr.bf16.mxu0 0
      %1743 = vmatpush2.bf16.msra.mxu0 0
      %1744 = vmatprep.subr.bf16.mxu0 0
      %1745 = vmatpush2.bf16.msra.mxu0 0
      %1746 = vmatprep.subr.bf16.mxu0 0
      %1747 = vmatpush2.bf16.msra.mxu0 0
      %1748 = vmatprep.subr.bf16.mxu0 0
      %1749 = vmatpush2.bf16.msra.mxu0 0
      %1750 = vmatprep.subr.bf16.mxu0 0
      %1751 = vmatpush2.bf16.msra.mxu0 0
      %1752 = vmatprep.mubr.bf16.mxu0 0
      %1753 = vmatmul.mubr.bf16.gmra.mxu0 %v602
      %v1754 = vpop.f32.mrf.mxu0
      %v1755 = vadd.f32 %v1706, %v1754
      %v1756 = vpop.f32.mrf.mxu0
      %v1757 = vpop.f32.mrf.mxu0
      %v1758 = vpop.f32.mrf.mxu0
      %1759 = vdwg.mxu0
      %s1760 = scalar_lea.vmem %s7, 48
      %v1761 = vld [vmem:[%s1760] sm:$0xf]
      %v1762 = vld [vmem:[%s1760 + $0x4] sm:$0xf]
      %v1763 = vld [vmem:[%s1760 + $0x8] sm:$0xf]
      %v1764 = vld [vmem:[%s1760 + $0xc] sm:$0xf]
      %s1765 = scalar_lea.vmem %s8, 3
      %v1766 = vld [vmem:[%s1765] sm:$0x1]
      %v1768 = vlaneseq
      %v1769 = vshrl.u32 %v1768, 7
      %v1770 = vsub.s32 0, %v1769
      %v1771 = vrot.slane %v1766, %v1770
      %v1777 = vunpack.c.l.b16 %v1761
      %v1778 = vunpack.c.l.b16 %v1762
      %v1779 = vunpack.c.l.b16 %v1763
      %v1780 = vunpack.c.l.b16 %v1764
      %v1781 = vpack.c.b16 %v1778, %v1777
      %v1782 = vpack.c.b16 %v1780, %v1779
      %1785 = vmatprep.subr.bf16.mxu0 0
      %1786 = vmatpush1.bf16.msra.mxu0 0
      %1787 = vmatprep.subr.bf16.mxu0 0
      %1788 = vmatpush1.bf16.msra.mxu0 0
      %1789 = vmatprep.subr.bf16.mxu0 0
      %1790 = vmatpush1.bf16.msra.mxu0 0
      %1791 = vmatprep.subr.bf16.mxu0 0
      %1792 = vmatpush1.bf16.msra.mxu0 0
      %1793 = vmatprep.subr.bf16.mxu0 0
      %1794 = vmatpush1.bf16.msra.mxu0 0
      %1795 = vmatprep.subr.bf16.mxu0 0
      %1796 = vmatpush1.bf16.msra.mxu0 0
      %1797 = vmatprep.subr.bf16.mxu0 0
      %1798 = vmatpush1.bf16.msra.mxu0 %v1782
      %1799 = vmatprep.subr.bf16.mxu0 0
      %1800 = vmatpush1.bf16.msra.mxu0 %v1781
      %1801 = vmatprep.subr.bf16.mxu0 0
      %1802 = vmatpush2.bf16.msra.mxu0 0
      %1803 = vmatprep.subr.bf16.mxu0 0
      %1804 = vmatpush2.bf16.msra.mxu0 0
      %1805 = vmatprep.subr.bf16.mxu0 0
      %1806 = vmatpush2.bf16.msra.mxu0 0
      %1807 = vmatprep.subr.bf16.mxu0 0
      %1808 = vmatpush2.bf16.msra.mxu0 0
      %1809 = vmatprep.subr.bf16.mxu0 0
      %1810 = vmatpush2.bf16.msra.mxu0 0
      %1811 = vmatprep.subr.bf16.mxu0 0
      %1812 = vmatpush2.bf16.msra.mxu0 0
      %1813 = vmatprep.subr.bf16.mxu0 0
      %1814 = vmatpush2.bf16.msra.mxu0 0
      %1815 = vmatprep.subr.bf16.mxu0 0
      %1816 = vmatpush2.bf16.msra.mxu0 0
      %1817 = vmatprep.mubr.bf16.mxu0 0
      %1818 = vmatmul.mubr.bf16.gmra.mxu0 %v602
      %v1819 = vpop.f32.mrf.mxu0
      %v1820 = vadd.f32 %v1771, %v1819
      %v1821 = vpop.f32.mrf.mxu0
      %v1822 = vpop.f32.mrf.mxu0
      %v1823 = vpop.f32.mrf.mxu0
      %1824 = vdwg.mxu0
      %v1825 = vpack.c.bf16 %v1690, %v1690
      %v1826 = vpack.c.bf16 %v1755, %v1755
      %v1828 = vsel %vm772, %v1825, 0
      %v1831 = vsel %vm772, %v1826, 0
      %1833 = vmatprep.subr.bf16.mxu0 0
      %1834 = vmatpush1.bf16.xpose.msra.mxu0 0
      %1835 = vmatprep.subr.bf16.mxu0 0
      %1836 = vmatpush1.bf16.xpose.msra.mxu0 0
      %1837 = vmatprep.subr.bf16.mxu0 0
      %1838 = vmatpush1.bf16.xpose.msra.mxu0 0
      %1839 = vmatprep.subr.bf16.mxu0 0
      %1840 = vmatpush1.bf16.xpose.msra.mxu0 0
      %1841 = vmatprep.subr.bf16.mxu0 0
      %1842 = vmatpush1.bf16.xpose.msra.mxu0 0
      %1843 = vmatprep.subr.bf16.mxu0 0
      %1844 = vmatpush1.bf16.xpose.msra.mxu0 0
      %1845 = vmatprep.subr.bf16.mxu0 0
      %1846 = vmatpush1.bf16.xpose.msra.mxu0 0
      %1847 = vmatprep.subr.bf16.mxu0 0
      %1848 = vmatpush1.bf16.xpose.msra.mxu0 %v1831
      %1849 = vmatprep.subr.bf16.mxu0 0
      %1850 = vmatpush2.bf16.xpose.msra.mxu0 0
      %1851 = vmatprep.subr.bf16.mxu0 0
      %1852 = vmatpush2.bf16.xpose.msra.mxu0 0
      %1853 = vmatprep.subr.bf16.mxu0 0
      %1854 = vmatpush2.bf16.xpose.msra.mxu0 0
      %1855 = vmatprep.subr.bf16.mxu0 0
      %1856 = vmatpush2.bf16.xpose.msra.mxu0 0
      %1857 = vmatprep.subr.bf16.mxu0 0
      %1858 = vmatpush2.bf16.xpose.msra.mxu0 0
      %1859 = vmatprep.subr.bf16.mxu0 0
      %1860 = vmatpush2.bf16.xpose.msra.mxu0 0
      %1861 = vmatprep.subr.bf16.mxu0 0
      %1862 = vmatpush2.bf16.xpose.msra.mxu0 0
      %1863 = vmatprep.subr.bf16.mxu0 0
      %1864 = vmatpush2.bf16.xpose.msra.mxu0 0
      %1865 = vmatprep.mubr.bf16.mxu0 0
      %1866 = vmatmul.mubr.bf16.gmra.mxu0 %v1828
      %v1867 = vpop.f32.mrf.mxu0
      %v1868 = vadd.f32 0.0, %v1867
      %v1869 = vpop.f32.mrf.mxu0
      %v1870 = vpop.f32.mrf.mxu0
      %v1871 = vpop.f32.mrf.mxu0
      %1872 = vdwg.mxu0
      %v1873 = vsel %vm772, %v1868, -inf
      %1874 = vmax.xlane.f32.xlu0 %v1873
      %v1875 = vpop.xlane.xlu0 %1874
      %v1876 = vsub.f32 %v1868, %v1875
      %v1877 = vmul.f32 %v1876, 1.442695
      %v1878 = vpow.pop %v1877
      %v1879 = vsel %vm772, %v1878, 0.0
      %1880 = vadd.xlane.f32.xlu0 %v1879
      %v1881 = vpop.xlane.xlu0 %1880
      %v1882 = vrcp.pop %v1881
      %v1883 = vmul.f32 %v1878, %v1882
      %v1884 = vpack.c.bf16 %v1883, %v1883
      %v1885 = vpack.c.bf16 %v1820, %v1820
      %v1887 = vsel %vm772, %v1884, 0
      %v1890 = vsel %vm835, %v1885, 0
      %1892 = vmatprep.subr.bf16.mxu0 0
      %1893 = vmatpush1.bf16.msra.mxu0 0
      %1894 = vmatprep.subr.bf16.mxu0 0
      %1895 = vmatpush1.bf16.msra.mxu0 0
      %1896 = vmatprep.subr.bf16.mxu0 0
      %1897 = vmatpush1.bf16.msra.mxu0 0
      %1898 = vmatprep.subr.bf16.mxu0 0
      %1899 = vmatpush1.bf16.msra.mxu0 0
      %1900 = vmatprep.subr.bf16.mxu0 0
      %1901 = vmatpush1.bf16.msra.mxu0 0
      %1902 = vmatprep.subr.bf16.mxu0 0
      %1903 = vmatpush1.bf16.msra.mxu0 0
      %1904 = vmatprep.subr.bf16.mxu0 0
      %1905 = vmatpush1.bf16.msra.mxu0 0
      %1906 = vmatprep.subr.bf16.mxu0 0
      %1907 = vmatpush1.bf16.msra.mxu0 %v1890
      %1908 = vmatprep.subr.bf16.mxu0 0
      %1909 = vmatpush2.bf16.msra.mxu0 0
      %1910 = vmatprep.subr.bf16.mxu0 0
      %1911 = vmatpush2.bf16.msra.mxu0 0
      %1912 = vmatprep.subr.bf16.mxu0 0
      %1913 = vmatpush2.bf16.msra.mxu0 0
      %1914 = vmatprep.subr.bf16.mxu0 0
      %1915 = vmatpush2.bf16.msra.mxu0 0
      %1916 = vmatprep.subr.bf16.mxu0 0
      %1917 = vmatpush2.bf16.msra.mxu0 0
      %1918 = vmatprep.subr.bf16.mxu0 0
      %1919 = vmatpush2.bf16.msra.mxu0 0
      %1920 = vmatprep.subr.bf16.mxu0 0
      %1921 = vmatpush2.bf16.msra.mxu0 0
      %1922 = vmatprep.subr.bf16.mxu0 0
      %1923 = vmatpush2.bf16.msra.mxu0 0
      %1924 = vmatprep.mubr.bf16.mxu0 0
      %1925 = vmatmul.mubr.bf16.gmra.mxu0 %v1887
      %v1926 = vpop.f32.mrf.mxu0
      %v1927 = vadd.f32 0.0, %v1926
      %v1928 = vpop.f32.mrf.mxu0
      %v1929 = vpop.f32.mrf.mxu0
      %v1930 = vpop.f32.mrf.mxu0
      %1931 = vdwg.mxu0
      %v1932 = vpack.c.bf16 %v1927, %v1927
      %s1933 = scalar_lea.vmem %s9, 12
      %v1934 = vld [vmem:[%s1933] sm:$0xf]
      %v1936 = vsel %vm772, %v1932, 0
      %v1939 = vsel %vm835, %v1934, 0
      %1941 = vmatprep.subr.bf16.mxu0 0
      %1942 = vmatpush1.bf16.msra.mxu0 0
      %1943 = vmatprep.subr.bf16.mxu0 0
      %1944 = vmatpush1.bf16.msra.mxu0 0
      %1945 = vmatprep.subr.bf16.mxu0 0
      %1946 = vmatpush1.bf16.msra.mxu0 0
      %1947 = vmatprep.subr.bf16.mxu0 0
      %1948 = vmatpush1.bf16.msra.mxu0 0
      %1949 = vmatprep.subr.bf16.mxu0 0
      %1950 = vmatpush1.bf16.msra.mxu0 0
      %1951 = vmatprep.subr.bf16.mxu0 0
      %1952 = vmatpush1.bf16.msra.mxu0 0
      %1953 = vmatprep.subr.bf16.mxu0 0
      %1954 = vmatpush1.bf16.msra.mxu0 0
      %1955 = vmatprep.subr.bf16.mxu0 0
      %1956 = vmatpush1.bf16.msra.mxu0 %v1939
      %1957 = vmatprep.subr.bf16.mxu0 0
      %1958 = vmatpush2.bf16.msra.mxu0 0
      %1959 = vmatprep.subr.bf16.mxu0 0
      %1960 = vmatpush2.bf16.msra.mxu0 0
      %1961 = vmatprep.subr.bf16.mxu0 0
      %1962 = vmatpush2.bf16.msra.mxu0 0
      %1963 = vmatprep.subr.bf16.mxu0 0
      %1964 = vmatpush2.bf16.msra.mxu0 0
      %1965 = vmatprep.subr.bf16.mxu0 0
      %1966 = vmatpush2.bf16.msra.mxu0 0
      %1967 = vmatprep.subr.bf16.mxu0 0
      %1968 = vmatpush2.bf16.msra.mxu0 0
      %1969 = vmatprep.subr.bf16.mxu0 0
      %1970 = vmatpush2.bf16.msra.mxu0 0
      %1971 = vmatprep.subr.bf16.mxu0 0
      %1972 = vmatpush2.bf16.msra.mxu0 0
      %1973 = vmatprep.mubr.bf16.mxu0 0
      %1974 = vmatmul.mubr.bf16.gmra.mxu0 %v1936
      %v1975 = vpop.f32.mrf.mxu0
      %v1976 = vadd.f32 0.0, %v1975
      %v1977 = vpop.f32.mrf.mxu0
      %v1978 = vpop.f32.mrf.mxu0
      %v1979 = vpop.f32.mrf.mxu0
      %1980 = vdwg.mxu0
      %v1981 = vadd.f32 %v1629, %v1976
      %v1982 = vadd.f32 %v545, %v1981
      %v1983 = vld [vmem:[%s10] sm:$0x1]
      %v1985 = vlaneseq
      %v1986 = vshrl.u32 %v1985, 7
      %v1987 = vsub.s32 0, %v1986
      %v1988 = vrot.slane %v1983, %v1987
      %v1990 = vadd.f32 %v1982, %v1988
      %v1991 = vsel %vm546, %v1990, 0.0
      %1992 = vadd.xlane.f32.xlu0 %v1991
      %v1993 = vpop.xlane.xlu0 %1992
      %v1994 = vmul.f32 %v1993, %v550
      %v1995 = vsub.f32 %v1990, %v1994
      %v1996 = vmul.f32 %v1995, %v1995
      %v1997 = vsel %vm546, %v1996, 0.0
      %1998 = vadd.xlane.f32.xlu0 %v1997
      %v1999 = vpop.xlane.xlu0 %1998
      %v2000 = vmul.f32 %v1999, %v550
      %v2001 = vadd.f32 %v2000, 1e-05
      %v2002 = vrsqrt.pop %v2001
      %v2003 = vmul.f32 %v1995, %v2002
      %v2004 = vld [vmem:[%s11] sm:$0x1]
      %v2006 = vlaneseq
      %v2007 = vshrl.u32 %v2006, 7
      %v2008 = vsub.s32 0, %v2007
      %v2009 = vrot.slane %v2004, %v2008
      %v2011 = vmul.f32 %v2003, %v2009
      %v2012 = vld [vmem:[%s12] sm:$0x1]
      %v2014 = vlaneseq
      %v2015 = vshrl.u32 %v2014, 7
      %v2016 = vsub.s32 0, %v2015
      %v2017 = vrot.slane %v2012, %v2016
      %v2019 = vadd.f32 %v2011, %v2017
      %v2020 = vpack.c.bf16 %v2019, %v2019
      %v2021 = vld [vmem:[%s13] sm:$0xf]
      %v2022 = vld [vmem:[%s13 + $0x4] sm:$0xf]
      %v2023 = vld [vmem:[%s13 + $0x8] sm:$0xf]
      %v2024 = vld [vmem:[%s13 + $0xc] sm:$0xf]
      %v2025 = vld [vmem:[%s14] sm:$0x1]
      %v2027 = vlaneseq
      %v2028 = vshrl.u32 %v2027, 7
      %v2029 = vsub.s32 0, %v2028
      %v2030 = vrot.slane %v2025, %v2029
      %v2036 = vunpack.c.l.b16 %v2021
      %v2037 = vunpack.c.l.b16 %v2022
      %v2038 = vunpack.c.l.b16 %v2023
      %v2039 = vunpack.c.l.b16 %v2024
      %v2040 = vpack.c.b16 %v2037, %v2036
      %v2041 = vpack.c.b16 %v2039, %v2038
      %v2045 = vsel %vm546, %v2020, 0
      %2047 = vmatprep.subr.bf16.mxu0 0
      %2048 = vmatpush1.bf16.msra.mxu0 0
      %2049 = vmatprep.subr.bf16.mxu0 0
      %2050 = vmatpush1.bf16.msra.mxu0 0
      %2051 = vmatprep.subr.bf16.mxu0 0
      %2052 = vmatpush1.bf16.msra.mxu0 0
      %2053 = vmatprep.subr.bf16.mxu0 0
      %2054 = vmatpush1.bf16.msra.mxu0 0
      %2055 = vmatprep.subr.bf16.mxu0 0
      %2056 = vmatpush1.bf16.msra.mxu0 0
      %2057 = vmatprep.subr.bf16.mxu0 0
      %2058 = vmatpush1.bf16.msra.mxu0 0
      %2059 = vmatprep.subr.bf16.mxu0 0
      %2060 = vmatpush1.bf16.msra.mxu0 %v2041
      %2061 = vmatprep.subr.bf16.mxu0 0
      %2062 = vmatpush1.bf16.msra.mxu0 %v2040
      %2063 = vmatprep.subr.bf16.mxu0 0
      %2064 = vmatpush2.bf16.msra.mxu0 0
      %2065 = vmatprep.subr.bf16.mxu0 0
      %2066 = vmatpush2.bf16.msra.mxu0 0
      %2067 = vmatprep.subr.bf16.mxu0 0
      %2068 = vmatpush2.bf16.msra.mxu0 0
      %2069 = vmatprep.subr.bf16.mxu0 0
      %2070 = vmatpush2.bf16.msra.mxu0 0
      %2071 = vmatprep.subr.bf16.mxu0 0
      %2072 = vmatpush2.bf16.msra.mxu0 0
      %2073 = vmatprep.subr.bf16.mxu0 0
      %2074 = vmatpush2.bf16.msra.mxu0 0
      %2075 = vmatprep.subr.bf16.mxu0 0
      %2076 = vmatpush2.bf16.msra.mxu0 0
      %2077 = vmatprep.subr.bf16.mxu0 0
      %2078 = vmatpush2.bf16.msra.mxu0 0
      %2079 = vmatprep.mubr.bf16.mxu0 0
      %2080 = vmatmul.mubr.bf16.gmra.mxu0 %v2045
      %v2081 = vpop.f32.mrf.mxu0
      %v2082 = vadd.f32 %v2030, %v2081
      %v2083 = vpop.f32.mrf.mxu0
      %v2084 = vpop.f32.mrf.mxu0
      %v2085 = vpop.f32.mrf.mxu0
      %2086 = vdwg.mxu0
      %v2087 = vmul.f32 %v2082, 0.5
      %v2088 = vmul.f32 %v2082, 0.70710677
      %v2089 = verf.f32.pop %v2088
      %v2090 = vadd.f32 %v2089, 1.0
      %v2091 = vmul.f32 %v2087, %v2090
      %v2092 = vpack.c.bf16 %v2091, %v2091
      %v2093 = vld [vmem:[%s15] sm:$0xf]
      %v2094 = vld [vmem:[%s15 + $0x4] sm:$0xf]
      %v2095 = vld [vmem:[%s15 + $0x8] sm:$0xf]
      %v2096 = vld [vmem:[%s15 + $0xc] sm:$0xf]
      %v2097 = vld [vmem:[%s15 + $0x10] sm:$0xf]
      %v2098 = vld [vmem:[%s15 + $0x14] sm:$0xf]
      %v2099 = vld [vmem:[%s15 + $0x18] sm:$0xf]
      %v2100 = vld [vmem:[%s15 + $0x1c] sm:$0xf]
      %v2101 = vld [vmem:[%s16] sm:$0x1]
      %v2103 = vlaneseq
      %v2104 = vshrl.u32 %v2103, 7
      %v2105 = vsub.s32 0, %v2104
      %v2106 = vrot.slane %v2101, %v2105
      %v2116 = vunpack.c.l.b16 %v2093
      %v2117 = vunpack.c.l.b16 %v2094
      %v2118 = vunpack.c.l.b16 %v2095
      %v2119 = vunpack.c.l.b16 %v2096
      %v2120 = vunpack.c.l.b16 %v2097
      %v2121 = vunpack.c.l.b16 %v2098
      %v2122 = vunpack.c.l.b16 %v2099
      %v2123 = vunpack.c.l.b16 %v2100
      %v2124 = vpack.c.b16 %v2117, %v2116
      %v2125 = vpack.c.b16 %v2119, %v2118
      %v2126 = vpack.c.b16 %v2121, %v2120
      %v2127 = vpack.c.b16 %v2123, %v2122
      %vm2132 = vcmask 523264
      %v2134 = vsel %vm2132, %v2092, 0
      %2136 = vmatprep.subr.bf16.mxu0 0
      %2137 = vmatpush1.bf16.msra.mxu0 0
      %2138 = vmatprep.subr.bf16.mxu0 0
      %2139 = vmatpush1.bf16.msra.mxu0 0
      %2140 = vmatprep.subr.bf16.mxu0 0
      %2141 = vmatpush1.bf16.msra.mxu0 0
      %2142 = vmatprep.subr.bf16.mxu0 0
      %2143 = vmatpush1.bf16.msra.mxu0 0
      %2144 = vmatprep.subr.bf16.mxu0 0
      %2145 = vmatpush1.bf16.msra.mxu0 %v2127
      %2146 = vmatprep.subr.bf16.mxu0 0
      %2147 = vmatpush1.bf16.msra.mxu0 %v2126
      %2148 = vmatprep.subr.bf16.mxu0 0
      %2149 = vmatpush1.bf16.msra.mxu0 %v2125
      %2150 = vmatprep.subr.bf16.mxu0 0
      %2151 = vmatpush1.bf16.msra.mxu0 %v2124
      %2152 = vmatprep.subr.bf16.mxu0 0
      %2153 = vmatpush2.bf16.msra.mxu0 0
      %2154 = vmatprep.subr.bf16.mxu0 0
      %2155 = vmatpush2.bf16.msra.mxu0 0
      %2156 = vmatprep.subr.bf16.mxu0 0
      %2157 = vmatpush2.bf16.msra.mxu0 0
      %2158 = vmatprep.subr.bf16.mxu0 0
      %2159 = vmatpush2.bf16.msra.mxu0 0
      %2160 = vmatprep.subr.bf16.mxu0 0
      %2161 = vmatpush2.bf16.msra.mxu0 0
      %2162 = vmatprep.subr.bf16.mxu0 0
      %2163 = vmatpush2.bf16.msra.mxu0 0
      %2164 = vmatprep.subr.bf16.mxu0 0
      %2165 = vmatpush2.bf16.msra.mxu0 0
      %2166 = vmatprep.subr.bf16.mxu0 0
      %2167 = vmatpush2.bf16.msra.mxu0 0
      %2168 = vmatprep.mubr.bf16.mxu0 0
      %2169 = vmatmul.mubr.bf16.gmra.mxu0 %v2134
      %v2170 = vpop.f32.mrf.mxu0
      %v2171 = vadd.f32 %v2106, %v2170
      %v2172 = vpop.f32.mrf.mxu0
      %v2173 = vpop.f32.mrf.mxu0
      %v2174 = vpop.f32.mrf.mxu0
      %2175 = vdwg.mxu0
      %v2176 = vadd.f32 %v1990, %v2171
      %2177 = vst.msk [vmem:[%s543] sm:$0xff] %vm546, %v2176
      %p2178 = scmp.lt.s32.totalorder %s28, 1
      %s2179 = scalar_select %p2178, %s28, 1
      %s2180 = smul.addr %s2179, 8
      %s2181 = scalar_lea.vmem %s17, %s2180
      // Predicated region
      $region89: #{attention_block.1} parent=87 // pred_check
        %p2182 = pneg %p408
      $region90: #{attention_block.1} parent=87 // pred_check_branch
        %2184 = sbr.rel (%p2182) target = $region92
      $region91: #{attention_block.1} parent=87 // pred_region
        _
      $region92: #{attention_block.1} parent=87 // pred_fallthru
        _
    $region88: #{attention_block.1} parent=5 // pred_fallthru
      _
    %p2185 = scmp.le.s32.totalorder 2, %s23
    // Predicated region
    $region93: #{attention_block.1} parent=5 // pred_check
      %p2186 = pneg %p2185
    $region94: #{attention_block.1} parent=5 // pred_check_branch
      %2188 = sbr.rel (%p2186) target = $region96
    $region95: #{attention_block.1} parent=5 // pred_region
      %s2189 = ssub.s32 %s23, 2
      // Predicated region
      $region97: #{attention_block.1} parent=95 // pred_check
        %p2190 = pneg %p414
      $region98: #{attention_block.1} parent=95 // pred_check_branch
        %2192 = sbr.rel (%p2190) target = $region100
      $region99: #{attention_block.1} parent=95 // pred_region
        %p2193 = scmp.lt.s32.totalorder %s29, 1
        %s2194 = scalar_select %p2193, %s29, 1
        %s2195 = smul.addr %s2194, 8
        %s2196 = scalar_lea.vmem %s17, %s2195
      $region100: #{attention_block.1} parent=95 // pred_fallthru
        _
    $region96: #{attention_block.1} parent=5 // pred_fallthru
      _
  $region6: #{attention_block.1} parent=0 // loop_footer
    %s27 = sadd.s32 1, %s23
  $region7: #{attention_block.1} parent=0 // loop_footer_branch
    %22 = sbr.rel target = $region3
  $region8: #{attention_block.1} parent=0 // loop_exit
    _

</llo_original>
